<compile_context>
chip_gen: v7x
topology: tpu7x:2x2x1
jax: 0.10.0
libtpu: 0.0.40
codegen_flags: <defaults>
</compile_context>

<pallas_src>
import functools
import math

import jax
import jax.numpy as jnp
from jax.experimental import pallas as pl
from jax.experimental.pallas import tpu as pltpu

LANE = 128
SUBLANE = 8


def _round_up(x, m):
    return (x + m - 1) // m * m


def gru_block_kernel(x_ref, h0_ref,
                     w_in_ref, b_lin_ref,
                     w_ih_ref, b_ih_ref,
                     w_hh_ref, b_hh_ref,
                     out_ref, h_scratch, *, steps, batch):
    """One grid step == `steps` timesteps of Linear + ELU + GRUCell.

    x_ref    : (steps*B, S+A)  concat(embedded_state, action), matmul dtype
    h0_ref   : (B, D) f32      initial deterministic state (read at grid step 0)
    w_in_ref : (S+A, Hp)       linear weight (transposed), matmul dtype
    b_lin_ref: (1, Hp) f32
    w_ih_ref : (Hp, 3D)        GRU input->hidden weights (gate order r, z, n)
    b_ih_ref : (1, 3D) f32
    w_hh_ref : (D, 3D) f32     GRU hidden->hidden weights (f32: serial path, no drift)
    b_hh_ref : (1, 3D) f32
    out_ref  : (steps*B, D)    deterministic states for the U timesteps
    h_scratch: (B, D) f32      hidden state carried in VMEM across grid steps
    """
    B = batch
    D = h_scratch.shape[1]

    @pl.when(pl.program_id(0) == 0)
    def _():
        h_scratch[...] = h0_ref[...].astype(jnp.float32)

    mm_dtype = w_in_ref.dtype

    # ---- Hoisted (time-independent) part: all `steps` timesteps at once ----
    # M = steps*B fills MXU sublanes instead of M = B.
    pre = (jnp.dot(x_ref[...], w_in_ref[...],
                   preferred_element_type=jnp.float32)
           + b_lin_ref[...])
    # ELU (alpha=1.0, PyTorch default). exp input clamped so the discarded
    # positive branch can't overflow.
    # TODO(synk): switch negative branch to jnp.expm1 once Mosaic lowering is confirmed.
    act = jnp.where(pre > 0, pre, jnp.exp(jnp.minimum(pre, 0.0)) - 1.0)
    gi = (jnp.dot(act.astype(mm_dtype), w_ih_ref[...],
                  preferred_element_type=jnp.float32)
          + b_ih_ref[...])                                  # (steps*B, 3D) f32

    # ---- Serial recurrence: only h @ w_hh + gate math remains per step ----
    h = h_scratch[...]                                      # (B, D) f32
    w_hh = w_hh_ref[...]
    b_hh = b_hh_ref[...]
    outs = []
    for t in range(steps):                                  # static unroll (steps is small)
        gi_t = gi[t * B:(t + 1) * B, :]                     # static slice
        gh = jnp.dot(h, w_hh, preferred_element_type=jnp.float32) + b_hh
        i_r, i_z, i_n = gi_t[:, 0:D], gi_t[:, D:2 * D], gi_t[:, 2 * D:3 * D]
        h_r, h_z, h_n = gh[:, 0:D], gh[:, D:2 * D], gh[:, 2 * D:3 * D]
        r = jax.nn.sigmoid(i_r + h_r)
        z = jax.nn.sigmoid(i_z + h_z)
        n = jnp.tanh(i_n + r * h_n)
        h = (1.0 - z) * n + z * h                           # f32 gate math (v5e-safe)
        outs.append(h)

    h_scratch[...] = h
    # One sublane/lane-dense (steps*B, D) slab store instead of `steps` tiny ones.
    out_ref[...] = jnp.concatenate(outs, axis=0).astype(out_ref.dtype)


def recurrent_model_rollout(embedded_states, actions, deterministic, kparams,
                            *, block_t=8):
    """Fused multi-timestep rollout in a single pallas_call (time-blocked).

    embedded_states: (T, B, S), actions: (T, B, A), deterministic: (B, D).
    Returns all deterministic states, shape (T, B, D), float32.
    """
    T, B, S = embedded_states.shape
    A = actions.shape[2]
    D = deterministic.shape[1]
    SA = S + A
    Hp = kparams["w_in"].shape[1]
    G3 = kparams["w_ih"].shape[1]
    assert kparams["w_in"].shape[0] == SA

    # Unroll factor U: per-block row count U*B must be sublane-aligned (mult of 8).
    u_align = SUBLANE // math.gcd(B, SUBLANE)
    U = _round_up(max(1, min(block_t, T)), u_align)
    nblk = pl.cdiv(T, U)
    Tp = nblk * U

    # Concatenate state/action once for the whole sequence (removes per-step
    # split matmuls) and cast to the matmul dtype once (no per-step VPU casts).
    x = jnp.concatenate([embedded_states, actions], axis=-1)          # (T, B, SA)
    if Tp != T:
        x = jnp.pad(x, ((0, Tp - T), (0, 0), (0, 0)))
    x = x.reshape(Tp * B, SA).astype(kparams["w_in"].dtype)
    h0 = deterministic.astype(jnp.float32)

    # Weights / biases / h0: single-buffered VMEM residents (no pipelining).
    resident = pl.BlockSpec(memory_space=pltpu.MemorySpace.VMEM)

    grid_spec = pltpu.PrefetchScalarGridSpec(
        num_scalar_prefetch=0,
        grid=(nblk,),
        in_specs=[
            pl.BlockSpec((U * B, SA), lambda g: (g, 0)),   # x slab: U timesteps
            resident,                                      # h0
            resident,                                      # w_in
            resident,                                      # b_lin
            resident,                                      # w_ih
            resident,                                      # b_ih
            resident,                                      # w_hh
            resident,                                      # b_hh
        ],
        out_specs=pl.BlockSpec((U * B, D), lambda g: (g, 0)),
        scratch_shapes=[pltpu.VMEM((B, D), jnp.float32)],
    )

    # Explicit VMEM budget: residents + double-buffered x/out blocks + temps,
    # with headroom; clamped so it never exceeds v7x's 64 MiB physical VMEM.
    weight_bytes = sum(int(v.size) * v.dtype.itemsize for v in kparams.values())
    block_bytes = (2 * x.dtype.itemsize * U * B * SA      # x (double-buffered)
                   + 2 * 4 * U * B * D                    # out (double-buffered)
                   + 4 * U * B * (Hp + G3)                # act / gi temporaries
                   + 2 * 4 * B * D)                       # h0 + h_scratch
    vmem_limit = min(max(32 << 20, int(1.5 * (weight_bytes + block_bytes))), 64 << 20)

    kernel = functools.partial(gru_block_kernel, steps=U, batch=B)
    out = pl.pallas_call(
        kernel,
        out_shape=jax.ShapeDtypeStruct((Tp * B, D), jnp.float32),
        grid_spec=grid_spec,
        compiler_params=pltpu.CompilerParams(
            dimension_semantics=("arbitrary",),            # sequential recurrence over time blocks
            vmem_limit_bytes=vmem_limit,
        ),
    )(x, h0,
      kparams["w_in"], kparams["b_lin"],
      kparams["w_ih"], kparams["b_ih"],
      kparams["w_hh"], kparams["b_hh"])

    return out.reshape(Tp, B, D)[:T]


def recurrent_model_forward(embedded_state, action, deterministic, kparams):
    """Single-step forward matching RecurrentModel.forward (T == 1)."""
    out = recurrent_model_rollout(embedded_state[None], action[None],
                                  deterministic, kparams, block_t=1)
    return out[0]


def init_params(key, stochastic_size, action_size, hidden_size, deterministic_size):
    """PyTorch-like uniform init; logical (unpadded, transposed) parameter layout."""
    k = jax.random.split(key, 6)
    in_lin = stochastic_size + action_size

    def u(kk, shape, fan_in):
        bound = 1.0 / jnp.sqrt(jnp.float32(fan_in))
        return jax.random.uniform(kk, shape, jnp.float32, -bound, bound)

    return {
        # Linear(stochastic + action -> hidden)
        "w_lin": u(k[0], (in_lin, hidden_size), in_lin),
        "b_lin": u(k[1], (hidden_size,), in_lin),
        # GRUCell(hidden -> deterministic); gate order r, z, n (PyTorch convention)
        "w_ih": u(k[2], (hidden_size, 3 * deterministic_size), deterministic_size),
        "b_ih": u(k[3], (3 * deterministic_size,), deterministic_size),
        "w_hh": u(k[4], (deterministic_size, 3 * deterministic_size), deterministic_size),
        "b_hh": u(k[5], (3 * deterministic_size,), deterministic_size),
    }


def prepare_params(params, *, use_bf16=True):
    """One-time packing for the kernel:
      - keep a single merged linear weight (wrapper concatenates inputs once),
      - zero-pad the hidden width up to a multiple of 128 lanes
        (ELU(0)=0 and the padded w_ih rows are zero, so numerics are unchanged),
      - hoisted-path weights optionally bf16; biases and the serial-path
        recurrent weight w_hh stay f32 (no compounding bf16 drift over T)."""
    H = params["w_lin"].shape[1]
    Hp = _round_up(H, LANE)
    pad_h = Hp - H

    w_in = jnp.pad(params["w_lin"], ((0, 0), (0, pad_h)))
    b_lin = jnp.pad(params["b_lin"], (0, pad_h))[None, :]
    w_ih = jnp.pad(params["w_ih"], ((0, pad_h), (0, 0)))

    wdt = jnp.bfloat16 if use_bf16 else jnp.float32
    return {
        "w_in": w_in.astype(wdt),
        "b_lin": b_lin.astype(jnp.float32),
        "w_ih": w_ih.astype(wdt),
        "b_ih": params["b_ih"][None, :].astype(jnp.float32),
        "w_hh": params["w_hh"].astype(jnp.float32),
        "b_hh": params["b_hh"][None, :].astype(jnp.float32),
    }


def reference_step(embedded_state, action, deterministic, params):
    """Pure-JAX reference (matches PyTorch Linear + ELU + GRUCell)."""
    x = jnp.concatenate([embedded_state, action], axis=1)
    pre = x @ params["w_lin"] + params["b_lin"]
    act = jnp.where(pre > 0, pre, jnp.exp(jnp.minimum(pre, 0.0)) - 1.0)
    D = deterministic.shape[1]
    gi = act @ params["w_ih"] + params["b_ih"]
    gh = deterministic @ params["w_hh"] + params["b_hh"]
    i_r, i_z, i_n = gi[:, :D], gi[:, D:2 * D], gi[:, 2 * D:]
    h_r, h_z, h_n = gh[:, :D], gh[:, D:2 * D], gh[:, 2 * D:]
    r = jax.nn.sigmoid(i_r + h_r)
    z = jax.nn.sigmoid(i_z + h_z)
    n = jnp.tanh(i_n + r * h_n)
    return (1.0 - z) * n + z * deterministic


def reference_rollout(embedded_states, actions, deterministic, params):
    outs = []
    h = deterministic
    for t in range(embedded_states.shape[0]):
        h = reference_step(embedded_states[t], actions[t], h, params)
        outs.append(h)
    return jnp.stack(outs, axis=0)


if __name__ == "__main__":
    batch = 2
    stochastic_size = 32
    action_size = 6
    hidden_size = 64
    deterministic_size = 128
    seq = 8

    key = jax.random.PRNGKey(0)
    k_es, k_ac, k_det, k_par, k_ses, k_sac = jax.random.split(key, 6)

    embedded_state = jax.random.normal(k_es, (batch, stochastic_size), jnp.float32)
    action = jax.random.normal(k_ac, (batch, action_size), jnp.float32)
    deterministic = jax.random.normal(k_det, (batch, deterministic_size), jnp.float32)

    params = init_params(k_par, stochastic_size, action_size,
                         hidden_size, deterministic_size)

    # --- f32 weights: single-step forward (RecurrentModel.forward semantics) ---
    kparams_f32 = prepare_params(params, use_bf16=False)
    out = recurrent_model_forward(embedded_state, action, deterministic, kparams_f32)
    out = jax.block_until_ready(out)
    ref = reference_step(embedded_state, action, deterministic, params)
    assert out.shape == (batch, deterministic_size)
    assert jnp.allclose(out, ref, atol=1e-5, rtol=1e-5)

    # --- f32 weights: time-blocked rollout, single block (U = T) ---
    es_seq = jax.random.normal(k_ses, (seq, batch, stochastic_size), jnp.float32)
    ac_seq = jax.random.normal(k_sac, (seq, batch, action_size), jnp.float32)
    roll_ref = reference_rollout(es_seq, ac_seq, deterministic, params)
    roll = recurrent_model_rollout(es_seq, ac_seq, deterministic, kparams_f32, block_t=8)
    roll = jax.block_until_ready(roll)
    assert roll.shape == (seq, batch, deterministic_size)
    assert jnp.allclose(roll, roll_ref, atol=1e-4, rtol=1e-4)

    # --- multi-block rollout: h carried across grid steps in VMEM scratch ---
    roll_mb = recurrent_model_rollout(es_seq, ac_seq, deterministic, kparams_f32, block_t=4)
    roll_mb = jax.block_until_ready(roll_mb)
    assert jnp.allclose(roll_mb, roll_ref, atol=1e-4, rtol=1e-4)

    # --- T not divisible by the block (pad path) ---
    roll_pad = recurrent_model_rollout(es_seq[:7], ac_seq[:7], deterministic,
                                       kparams_f32, block_t=4)
    roll_pad = jax.block_until_ready(roll_pad)
    assert jnp.allclose(roll_pad, roll_ref[:7], atol=1e-4, rtol=1e-4)

    # --- default bf16 hoisted matmuls (v6e/v7x MXU + half the weight DMA);
    #     recurrent path and gate math stay f32 ---
    kparams_bf16 = prepare_params(params)                  # use_bf16=True default
    roll_bf16 = recurrent_model_rollout(es_seq, ac_seq, deterministic, kparams_bf16, block_t=8)
    roll_bf16 = jax.block_until_ready(roll_bf16)
    assert jnp.allclose(roll_bf16, roll_ref, atol=5e-2, rtol=5e-2)

    print("KERNEL_OK")
</pallas_src>

<mosaic_0001>
module attributes {stable_mosaic.version = 11 : i64} {
  func.func @gru_block_kernel(%arg0: i32, %arg1: memref<8x38xf32, #tpu.memory_space<vmem>>, %arg2: memref<2x128xf32, #tpu.memory_space<vmem>>, %arg3: memref<38x128xf32, #tpu.memory_space<vmem>>, %arg4: memref<1x128xf32, #tpu.memory_space<vmem>>, %arg5: memref<128x384xf32, #tpu.memory_space<vmem>>, %arg6: memref<1x384xf32, #tpu.memory_space<vmem>>, %arg7: memref<128x384xf32, #tpu.memory_space<vmem>>, %arg8: memref<1x384xf32, #tpu.memory_space<vmem>>, %arg9: memref<8x128xf32, #tpu.memory_space<vmem>>, %arg10: memref<2x128xf32, #tpu.memory_space<vmem>>) attributes {dimension_semantics = [#tpu.dimension_semantics<arbitrary>], iteration_bounds = array<i64: 1>, scalar_prefetch = 0 : i64, scratch_operands = 1 : i64, tpu.core_type = #tpu.core_type<tc>, window_params = [{transform_indices = @transform_0, window_bounds = array<i64: 8, 38>}, {pipeline_mode = #tpu.pipeline_mode<synchronous>, transform_indices = @transform_1, window_bounds = array<i64: 2, 128>}, {pipeline_mode = #tpu.pipeline_mode<synchronous>, transform_indices = @transform_2, window_bounds = array<i64: 38, 128>}, {pipeline_mode = #tpu.pipeline_mode<synchronous>, transform_indices = @transform_3, window_bounds = array<i64: 1, 128>}, {pipeline_mode = #tpu.pipeline_mode<synchronous>, transform_indices = @transform_4, window_bounds = array<i64: 128, 384>}, {pipeline_mode = #tpu.pipeline_mode<synchronous>, transform_indices = @transform_5, window_bounds = array<i64: 1, 384>}, {pipeline_mode = #tpu.pipeline_mode<synchronous>, transform_indices = @transform_6, window_bounds = array<i64: 128, 384>}, {pipeline_mode = #tpu.pipeline_mode<synchronous>, transform_indices = @transform_7, window_bounds = array<i64: 1, 384>}, {transform_indices = @transform_8, window_bounds = array<i64: 8, 128>}]} {
    %c0_i32 = arith.constant 0 : i32
    %0 = arith.cmpi eq, %arg0, %c0_i32 : i32
    %1 = arith.extui %0 : i1 to i32
    %c0_i32_0 = arith.constant 0 : i32
    %2 = arith.cmpi ne, %1, %c0_i32_0 : i32
    scf.if %2 {
      %c0_40 = arith.constant 0 : index
      %c0_41 = arith.constant 0 : index
      %148 = vector.load %arg2[%c0_40, %c0_41] : memref<2x128xf32, #tpu.memory_space<vmem>>, vector<2x128xf32>
      %c0_42 = arith.constant 0 : index
      %c0_43 = arith.constant 0 : index
      %149 = vector.load %arg10[%c0_42, %c0_43] : memref<2x128xf32, #tpu.memory_space<vmem>>, vector<2x128xf32>
      tpu.vector_store %arg10[%c0_42, %c0_43], %148 {strides = array<i32>} : memref<2x128xf32, #tpu.memory_space<vmem>>, vector<2x128xf32>,
    } else {
    }
    %c0 = arith.constant 0 : index
    %c0_1 = arith.constant 0 : index
    %3 = vector.load %arg1[%c0, %c0_1] : memref<8x38xf32, #tpu.memory_space<vmem>>, vector<8x38xf32>
    %c0_2 = arith.constant 0 : index
    %c0_3 = arith.constant 0 : index
    %4 = vector.load %arg3[%c0_2, %c0_3] : memref<38x128xf32, #tpu.memory_space<vmem>>, vector<38x128xf32>
    %cst = arith.constant dense<0.000000e+00> : vector<8x128xf32>
    %5 = tpu.matmul %3, %4, %cst {dimension_numbers = #tpu.dot_dimension_numbers<[1], [0], [0], [1], [0, 0, 1, 1], [], []>} : vector<8x38xf32>, vector<38x128xf32>, vector<8x128xf32> -> vector<8x128xf32>
    %c0_4 = arith.constant 0 : index
    %c0_5 = arith.constant 0 : index
    %6 = vector.load %arg4[%c0_4, %c0_5] : memref<1x128xf32, #tpu.memory_space<vmem>>, vector<1x128xf32>
    %7 = vector.broadcast %6 : vector<1x128xf32> to vector<8x128xf32>
    %8 = arith.addf %5, %7 : vector<8x128xf32>
    %cst_6 = arith.constant 0.000000e+00 : f32
    %9 = vector.broadcast %cst_6 : f32 to vector<8x128xf32>
    %10 = arith.cmpf ogt, %8, %9 : vector<8x128xf32>
    %cst_7 = arith.constant 0.000000e+00 : f32
    %11 = vector.broadcast %cst_7 : f32 to vector<8x128xf32>
    %12 = arith.minimumf %8, %11 : vector<8x128xf32>
    %13 = math.exp %12 : vector<8x128xf32>
    %cst_8 = arith.constant 1.000000e+00 : f32
    %14 = vector.broadcast %cst_8 : f32 to vector<8x128xf32>
    %15 = arith.subf %13, %14 : vector<8x128xf32>
    %16 = arith.select %10, %8, %15 : vector<8x128xi1>, vector<8x128xf32>
    %c0_9 = arith.constant 0 : index
    %c0_10 = arith.constant 0 : index
    %17 = vector.load %arg5[%c0_9, %c0_10] : memref<128x384xf32, #tpu.memory_space<vmem>>, vector<128x384xf32>
    %cst_11 = arith.constant dense<0.000000e+00> : vector<8x384xf32>
    %18 = tpu.matmul %16, %17, %cst_11 {dimension_numbers = #tpu.dot_dimension_numbers<[1], [0], [0], [1], [0, 0, 1, 1], [], []>} : vector<8x128xf32>, vector<128x384xf32>, vector<8x384xf32> -> vector<8x384xf32>
    %c0_12 = arith.constant 0 : index
    %c0_13 = arith.constant 0 : index
    %19 = vector.load %arg6[%c0_12, %c0_13] : memref<1x384xf32, #tpu.memory_space<vmem>>, vector<1x384xf32>
    %20 = vector.broadcast %19 : vector<1x384xf32> to vector<8x384xf32>
    %21 = arith.addf %18, %20 : vector<8x384xf32>
    %c0_14 = arith.constant 0 : index
    %c0_15 = arith.constant 0 : index
    %22 = vector.load %arg10[%c0_14, %c0_15] : memref<2x128xf32, #tpu.memory_space<vmem>>, vector<2x128xf32>
    %c0_16 = arith.constant 0 : index
    %c0_17 = arith.constant 0 : index
    %23 = vector.load %arg7[%c0_16, %c0_17] : memref<128x384xf32, #tpu.memory_space<vmem>>, vector<128x384xf32>
    %c0_18 = arith.constant 0 : index
    %c0_19 = arith.constant 0 : index
    %24 = vector.load %arg8[%c0_18, %c0_19] : memref<1x384xf32, #tpu.memory_space<vmem>>, vector<1x384xf32>
    %25 = vector.extract_strided_slice %21 {offsets = [0, 0], sizes = [2, 384], strides = [1, 1]} : vector<8x384xf32> to vector<2x384xf32>
    %cst_20 = arith.constant dense<0.000000e+00> : vector<2x384xf32>
    %26 = tpu.matmul %22, %23, %cst_20 {dimension_numbers = #tpu.dot_dimension_numbers<[1], [0], [0], [1], [0, 0, 1, 1], [], []>} : vector<2x128xf32>, vector<128x384xf32>, vector<2x384xf32> -> vector<2x384xf32>
    %27 = vector.broadcast %24 : vector<1x384xf32> to vector<2x384xf32>
    %28 = arith.addf %26, %27 : vector<2x384xf32>
    %29 = vector.extract_strided_slice %25 {offsets = [0, 0], sizes = [2, 128], strides = [1, 1]} : vector<2x384xf32> to vector<2x128xf32>
    %30 = vector.extract_strided_slice %25 {offsets = [0, 128], sizes = [2, 128], strides = [1, 1]} : vector<2x384xf32> to vector<2x128xf32>
    %31 = vector.extract_strided_slice %25 {offsets = [0, 256], sizes = [2, 128], strides = [1, 1]} : vector<2x384xf32> to vector<2x128xf32>
    %32 = vector.extract_strided_slice %28 {offsets = [0, 0], sizes = [2, 128], strides = [1, 1]} : vector<2x384xf32> to vector<2x128xf32>
    %33 = vector.extract_strided_slice %28 {offsets = [0, 128], sizes = [2, 128], strides = [1, 1]} : vector<2x384xf32> to vector<2x128xf32>
    %34 = vector.extract_strided_slice %28 {offsets = [0, 256], sizes = [2, 128], strides = [1, 1]} : vector<2x384xf32> to vector<2x128xf32>
    %35 = arith.addf %29, %32 : vector<2x128xf32>
    %36 = arith.negf %35 : vector<2x128xf32>
    %37 = math.exp %36 : vector<2x128xf32>
    %cst_21 = arith.constant 1.000000e+00 : f32
    %38 = vector.broadcast %cst_21 : f32 to vector<2x128xf32>
    %39 = arith.addf %38, %37 : vector<2x128xf32>
    %40 = arith.divf %38, %39 : vector<2x128xf32>
    %41 = arith.addf %30, %33 : vector<2x128xf32>
    %42 = arith.negf %41 : vector<2x128xf32>
    %43 = math.exp %42 : vector<2x128xf32>
    %cst_22 = arith.constant 1.000000e+00 : f32
    %44 = vector.broadcast %cst_22 : f32 to vector<2x128xf32>
    %45 = arith.addf %44, %43 : vector<2x128xf32>
    %46 = arith.divf %44, %45 : vector<2x128xf32>
    %47 = arith.mulf %40, %34 : vector<2x128xf32>
    %48 = arith.addf %31, %47 : vector<2x128xf32>
    %49 = math.tanh %48 : vector<2x128xf32>
    %cst_23 = arith.constant 1.000000e+00 : f32
    %50 = vector.broadcast %cst_23 : f32 to vector<2x128xf32>
    %51 = arith.subf %50, %46 : vector<2x128xf32>
    %52 = arith.mulf %51, %49 : vector<2x128xf32>
    %53 = arith.mulf %46, %22 : vector<2x128xf32>
    %54 = arith.addf %52, %53 : vector<2x128xf32>
    %55 = vector.extract_strided_slice %21 {offsets = [2, 0], sizes = [2, 384], strides = [1, 1]} : vector<8x384xf32> to vector<2x384xf32>
    %cst_24 = arith.constant dense<0.000000e+00> : vector<2x384xf32>
    %56 = tpu.matmul %54, %23, %cst_24 {dimension_numbers = #tpu.dot_dimension_numbers<[1], [0], [0], [1], [0, 0, 1, 1], [], []>} : vector<2x128xf32>, vector<128x384xf32>, vector<2x384xf32> -> vector<2x384xf32>
    %57 = vector.broadcast %24 : vector<1x384xf32> to vector<2x384xf32>
    %58 = arith.addf %56, %57 : vector<2x384xf32>
    %59 = vector.extract_strided_slice %55 {offsets = [0, 0], sizes = [2, 128], strides = [1, 1]} : vector<2x384xf32> to vector<2x128xf32>
    %60 = vector.extract_strided_slice %55 {offsets = [0, 128], sizes = [2, 128], strides = [1, 1]} : vector<2x384xf32> to vector<2x128xf32>
    %61 = vector.extract_strided_slice %55 {offsets = [0, 256], sizes = [2, 128], strides = [1, 1]} : vector<2x384xf32> to vector<2x128xf32>
    %62 = vector.extract_strided_slice %58 {offsets = [0, 0], sizes = [2, 128], strides = [1, 1]} : vector<2x384xf32> to vector<2x128xf32>
    %63 = vector.extract_strided_slice %58 {offsets = [0, 128], sizes = [2, 128], strides = [1, 1]} : vector<2x384xf32> to vector<2x128xf32>
    %64 = vector.extract_strided_slice %58 {offsets = [0, 256], sizes = [2, 128], strides = [1, 1]} : vector<2x384xf32> to vector<2x128xf32>
    %65 = arith.addf %59, %62 : vector<2x128xf32>
    %66 = arith.negf %65 : vector<2x128xf32>
    %67 = math.exp %66 : vector<2x128xf32>
    %cst_25 = arith.constant 1.000000e+00 : f32
    %68 = vector.broadcast %cst_25 : f32 to vector<2x128xf32>
    %69 = arith.addf %68, %67 : vector<2x128xf32>
    %70 = arith.divf %68, %69 : vector<2x128xf32>
    %71 = arith.addf %60, %63 : vector<2x128xf32>
    %72 = arith.negf %71 : vector<2x128xf32>
    %73 = math.exp %72 : vector<2x128xf32>
    %cst_26 = arith.constant 1.000000e+00 : f32
    %74 = vector.broadcast %cst_26 : f32 to vector<2x128xf32>
    %75 = arith.addf %74, %73 : vector<2x128xf32>
    %76 = arith.divf %74, %75 : vector<2x128xf32>
    %77 = arith.mulf %70, %64 : vector<2x128xf32>
    %78 = arith.addf %61, %77 : vector<2x128xf32>
    %79 = math.tanh %78 : vector<2x128xf32>
    %cst_27 = arith.constant 1.000000e+00 : f32
    %80 = vector.broadcast %cst_27 : f32 to vector<2x128xf32>
    %81 = arith.subf %80, %76 : vector<2x128xf32>
    %82 = arith.mulf %81, %79 : vector<2x128xf32>
    %83 = arith.mulf %76, %54 : vector<2x128xf32>
    %84 = arith.addf %82, %83 : vector<2x128xf32>
    %85 = vector.extract_strided_slice %21 {offsets = [4, 0], sizes = [2, 384], strides = [1, 1]} : vector<8x384xf32> to vector<2x384xf32>
    %cst_28 = arith.constant dense<0.000000e+00> : vector<2x384xf32>
    %86 = tpu.matmul %84, %23, %cst_28 {dimension_numbers = #tpu.dot_dimension_numbers<[1], [0], [0], [1], [0, 0, 1, 1], [], []>} : vector<2x128xf32>, vector<128x384xf32>, vector<2x384xf32> -> vector<2x384xf32>
    %87 = vector.broadcast %24 : vector<1x384xf32> to vector<2x384xf32>
    %88 = arith.addf %86, %87 : vector<2x384xf32>
    %89 = vector.extract_strided_slice %85 {offsets = [0, 0], sizes = [2, 128], strides = [1, 1]} : vector<2x384xf32> to vector<2x128xf32>
    %90 = vector.extract_strided_slice %85 {offsets = [0, 128], sizes = [2, 128], strides = [1, 1]} : vector<2x384xf32> to vector<2x128xf32>
    %91 = vector.extract_strided_slice %85 {offsets = [0, 256], sizes = [2, 128], strides = [1, 1]} : vector<2x384xf32> to vector<2x128xf32>
    %92 = vector.extract_strided_slice %88 {offsets = [0, 0], sizes = [2, 128], strides = [1, 1]} : vector<2x384xf32> to vector<2x128xf32>
    %93 = vector.extract_strided_slice %88 {offsets = [0, 128], sizes = [2, 128], strides = [1, 1]} : vector<2x384xf32> to vector<2x128xf32>
    %94 = vector.extract_strided_slice %88 {offsets = [0, 256], sizes = [2, 128], strides = [1, 1]} : vector<2x384xf32> to vector<2x128xf32>
    %95 = arith.addf %89, %92 : vector<2x128xf32>
    %96 = arith.negf %95 : vector<2x128xf32>
    %97 = math.exp %96 : vector<2x128xf32>
    %cst_29 = arith.constant 1.000000e+00 : f32
    %98 = vector.broadcast %cst_29 : f32 to vector<2x128xf32>
    %99 = arith.addf %98, %97 : vector<2x128xf32>
    %100 = arith.divf %98, %99 : vector<2x128xf32>
    %101 = arith.addf %90, %93 : vector<2x128xf32>
    %102 = arith.negf %101 : vector<2x128xf32>
    %103 = math.exp %102 : vector<2x128xf32>
    %cst_30 = arith.constant 1.000000e+00 : f32
    %104 = vector.broadcast %cst_30 : f32 to vector<2x128xf32>
    %105 = arith.addf %104, %103 : vector<2x128xf32>
    %106 = arith.divf %104, %105 : vector<2x128xf32>
    %107 = arith.mulf %100, %94 : vector<2x128xf32>
    %108 = arith.addf %91, %107 : vector<2x128xf32>
    %109 = math.tanh %108 : vector<2x128xf32>
    %cst_31 = arith.constant 1.000000e+00 : f32
    %110 = vector.broadcast %cst_31 : f32 to vector<2x128xf32>
    %111 = arith.subf %110, %106 : vector<2x128xf32>
    %112 = arith.mulf %111, %109 : vector<2x128xf32>
    %113 = arith.mulf %106, %84 : vector<2x128xf32>
    %114 = arith.addf %112, %113 : vector<2x128xf32>
    %115 = vector.extract_strided_slice %21 {offsets = [6, 0], sizes = [2, 384], strides = [1, 1]} : vector<8x384xf32> to vector<2x384xf32>
    %cst_32 = arith.constant dense<0.000000e+00> : vector<2x384xf32>
    %116 = tpu.matmul %114, %23, %cst_32 {dimension_numbers = #tpu.dot_dimension_numbers<[1], [0], [0], [1], [0, 0, 1, 1], [], []>} : vector<2x128xf32>, vector<128x384xf32>, vector<2x384xf32> -> vector<2x384xf32>
    %117 = vector.broadcast %24 : vector<1x384xf32> to vector<2x384xf32>
    %118 = arith.addf %116, %117 : vector<2x384xf32>
    %119 = vector.extract_strided_slice %115 {offsets = [0, 0], sizes = [2, 128], strides = [1, 1]} : vector<2x384xf32> to vector<2x128xf32>
    %120 = vector.extract_strided_slice %115 {offsets = [0, 128], sizes = [2, 128], strides = [1, 1]} : vector<2x384xf32> to vector<2x128xf32>
    %121 = vector.extract_strided_slice %115 {offsets = [0, 256], sizes = [2, 128], strides = [1, 1]} : vector<2x384xf32> to vector<2x128xf32>
    %122 = vector.extract_strided_slice %118 {offsets = [0, 0], sizes = [2, 128], strides = [1, 1]} : vector<2x384xf32> to vector<2x128xf32>
    %123 = vector.extract_strided_slice %118 {offsets = [0, 128], sizes = [2, 128], strides = [1, 1]} : vector<2x384xf32> to vector<2x128xf32>
    %124 = vector.extract_strided_slice %118 {offsets = [0, 256], sizes = [2, 128], strides = [1, 1]} : vector<2x384xf32> to vector<2x128xf32>
    %125 = arith.addf %119, %122 : vector<2x128xf32>
    %126 = arith.negf %125 : vector<2x128xf32>
    %127 = math.exp %126 : vector<2x128xf32>
    %cst_33 = arith.constant 1.000000e+00 : f32
    %128 = vector.broadcast %cst_33 : f32 to vector<2x128xf32>
    %129 = arith.addf %128, %127 : vector<2x128xf32>
    %130 = arith.divf %128, %129 : vector<2x128xf32>
    %131 = arith.addf %120, %123 : vector<2x128xf32>
    %132 = arith.negf %131 : vector<2x128xf32>
    %133 = math.exp %132 : vector<2x128xf32>
    %cst_34 = arith.constant 1.000000e+00 : f32
    %134 = vector.broadcast %cst_34 : f32 to vector<2x128xf32>
    %135 = arith.addf %134, %133 : vector<2x128xf32>
    %136 = arith.divf %134, %135 : vector<2x128xf32>
    %137 = arith.mulf %130, %124 : vector<2x128xf32>
    %138 = arith.addf %121, %137 : vector<2x128xf32>
    %139 = math.tanh %138 : vector<2x128xf32>
    %cst_35 = arith.constant 1.000000e+00 : f32
    %140 = vector.broadcast %cst_35 : f32 to vector<2x128xf32>
    %141 = arith.subf %140, %136 : vector<2x128xf32>
    %142 = arith.mulf %141, %139 : vector<2x128xf32>
    %143 = arith.mulf %136, %114 : vector<2x128xf32>
    %144 = arith.addf %142, %143 : vector<2x128xf32>
    %c0_36 = arith.constant 0 : index
    %c0_37 = arith.constant 0 : index
    %145 = vector.load %arg10[%c0_36, %c0_37] : memref<2x128xf32, #tpu.memory_space<vmem>>, vector<2x128xf32>
    tpu.vector_store %arg10[%c0_36, %c0_37], %144 {strides = array<i32>} : memref<2x128xf32, #tpu.memory_space<vmem>>, vector<2x128xf32>,
    %146 = tpu.concatenate %54, %84, %114, %144 in 0 : vector<2x128xf32>, vector<2x128xf32>, vector<2x128xf32>, vector<2x128xf32> -> vector<8x128xf32>
    %c0_38 = arith.constant 0 : index
    %c0_39 = arith.constant 0 : index
    %147 = vector.load %arg9[%c0_38, %c0_39] : memref<8x128xf32, #tpu.memory_space<vmem>>, vector<8x128xf32>
    tpu.vector_store %arg9[%c0_38, %c0_39], %146 {strides = array<i32>} : memref<8x128xf32, #tpu.memory_space<vmem>>, vector<8x128xf32>,
    return
  }
  func.func @transform_0(%arg0: i32) -> (i32, i32) {
    %c0_i32 = arith.constant 0 : i32
    %c0_i32_0 = arith.constant 0 : i32
    return %arg0, %c0_i32 : i32, i32
  }
  func.func @transform_1(%arg0: i32) -> (i32, i32) {
    %c0_i32 = arith.constant 0 : i32
    %c0_i32_0 = arith.constant 0 : i32
    %c0_i32_1 = arith.constant 0 : i32
    return %c0_i32, %c0_i32_0 : i32, i32
  }
  func.func @transform_2(%arg0: i32) -> (i32, i32) {
    %c0_i32 = arith.constant 0 : i32
    %c0_i32_0 = arith.constant 0 : i32
    %c0_i32_1 = arith.constant 0 : i32
    return %c0_i32, %c0_i32_0 : i32, i32
  }
  func.func @transform_3(%arg0: i32) -> (i32, i32) {
    %c0_i32 = arith.constant 0 : i32
    %c0_i32_0 = arith.constant 0 : i32
    %c0_i32_1 = arith.constant 0 : i32
    return %c0_i32, %c0_i32_0 : i32, i32
  }
  func.func @transform_4(%arg0: i32) -> (i32, i32) {
    %c0_i32 = arith.constant 0 : i32
    %c0_i32_0 = arith.constant 0 : i32
    %c0_i32_1 = arith.constant 0 : i32
    return %c0_i32, %c0_i32_0 : i32, i32
  }
  func.func @transform_5(%arg0: i32) -> (i32, i32) {
    %c0_i32 = arith.constant 0 : i32
    %c0_i32_0 = arith.constant 0 : i32
    %c0_i32_1 = arith.constant 0 : i32
    return %c0_i32, %c0_i32_0 : i32, i32
  }
  func.func @transform_6(%arg0: i32) -> (i32, i32) {
    %c0_i32 = arith.constant 0 : i32
    %c0_i32_0 = arith.constant 0 : i32
    %c0_i32_1 = arith.constant 0 : i32
    return %c0_i32, %c0_i32_0 : i32, i32
  }
  func.func @transform_7(%arg0: i32) -> (i32, i32) {
    %c0_i32 = arith.constant 0 : i32
    %c0_i32_0 = arith.constant 0 : i32
    %c0_i32_1 = arith.constant 0 : i32
    return %c0_i32, %c0_i32_0 : i32, i32
  }
  func.func @transform_8(%arg0: i32) -> (i32, i32) {
    %c0_i32 = arith.constant 0 : i32
    %c0_i32_0 = arith.constant 0 : i32
    return %arg0, %c0_i32 : i32, i32
  }
}

</mosaic_0001>

<llo_original>
// kernel: tpu_custom_call.1
$region0: #{tpu_custom_call.1}
  #allocation0 [shape = 'u32[]', space=smem, size = 0x4, offset = 0x4, fixed_abs, tag = 'smem constant byte address 0x4 - core index']
  #allocation1 [shape = 'u32[144,128]{1,0:T(1,128)}', space=vmem, size = 0x12000, scoped, tag = 'internal scratch']
  #allocation2 [shape = 'f32[2,128]{1,0:T(2,128)}', space=vmem, size = 0x400, scoped, tag = 'scratch operand']
  %s0 = inlined_call_operand.hbm [shape: f32[8,38], index: 0, kind: input, shape index: {}]
  %s1 = inlined_call_operand.hbm [shape: f32[2,128], index: 1, kind: input, shape index: {}]
  %s2 = inlined_call_operand.hbm [shape: f32[38,128], index: 2, kind: input, shape index: {}]
  %s3 = inlined_call_operand.vmem [shape: f32[1,128], index: 3, kind: input, shape index: {}]
  %s4 = inlined_call_operand.hbm [shape: f32[128,384], index: 4, kind: input, shape index: {}]
  %s5 = inlined_call_operand.vmem [shape: f32[1,384], index: 5, kind: input, shape index: {}]
  %s6 = inlined_call_operand.hbm [shape: f32[128,384], index: 6, kind: input, shape index: {}]
  %s7 = inlined_call_operand.vmem [shape: f32[1,384], index: 7, kind: input, shape index: {}]
  %s8 = inlined_call_operand.hbm [shape: f32[8,128], index: 8, kind: output, shape index: {}]
  %s9 = sld [smem:[#allocation0]]
  $region66: #{tpu_custom_call.1} parent=0
    _
  %s11 = ssub.s32 1, %s9
  %s12 = scalar_select 0, %s11, %s9
  $region1: #{tpu_custom_call.1} parent=0
    #allocation3 [shape = 'u8[4096]{0}', space=vmem, size = 0x1000, scoped, tag = 'input window, operand 0, single buffered']
    #allocation4 [shape = 's32[1]{0}', space=sflag, size = 0x4, scoped, tag = 'scoped memory for tpu_custom_call.1']
    #allocation5 [shape = 's32[1]{0}', space=sflag, size = 0x4, scoped, tag = 'scoped memory for tpu_custom_call.1']
    #allocation6 [shape = 'u8[1024]{0}', space=vmem, size = 0x400, scoped, tag = 'input window, operand 1, single buffered']
    #allocation7 [shape = 's32[1]{0}', space=sflag, size = 0x4, scoped, tag = 'scoped memory for tpu_custom_call.1']
    #allocation8 [shape = 'u8[20480]{0}', space=vmem, size = 0x5000, scoped, tag = 'input window, operand 2, single buffered']
    #allocation9 [shape = 'u8[196608]{0}', space=vmem, size = 0x30000, scoped, tag = 'input window, operand 4, single buffered']
    #allocation10 [shape = 's32[1]{0}', space=sflag, size = 0x4, scoped, tag = 'scoped memory for tpu_custom_call.1']
    #allocation11 [shape = 'u8[196608]{0}', space=vmem, size = 0x30000, scoped, tag = 'input window, operand 6, single buffered']
    #allocation12 [shape = 'u8[4096]{0}', space=vmem, size = 0x1000, scoped, tag = 'output window, operand 0, single buffered']
    %13 = vsyncpa [#allocation4], 0
    %14 = vsyncpa [#allocation7], 0
    %15 = vsyncpa [#allocation10], 0
    %16 = vsyncpa [#allocation5], 0
    // Predicated region
    $region2: #{tpu_custom_call.1} parent=1 // pred_check
      _
    $region3: #{tpu_custom_call.1} parent=1 // pred_check_branch
      %18 = sbr.rel (0) target = $region5
    $region4: #{tpu_custom_call.1} parent=1 // pred_region
      %s20 = ssub.s32 128, 128
      %21 = vsyncadd [#allocation4], %s20
      %s23 = sshll.u32 [#allocation3], 4
      %s24 = int_to_ptr.vmem [resolvable:$true] %s23
      %26 = dma.hbm_to_vmem [thread:$0]  %s0, 128, %s24, [#allocation4]
    $region5: #{tpu_custom_call.1} parent=1 // pred_fallthru
      _
    // Predicated region
    $region6: #{tpu_custom_call.1} parent=1 // pred_check
      _
    $region7: #{tpu_custom_call.1} parent=1 // pred_check_branch
      %28 = sbr.rel (0) target = $region9
    $region8: #{tpu_custom_call.1} parent=1 // pred_region
      %s30 = ssub.s32 32, 32
      %31 = vsyncadd [#allocation7], %s30
      %s33 = sshll.u32 [#allocation6], 4
      %s34 = int_to_ptr.vmem [resolvable:$true] %s33
      %36 = dma.hbm_to_vmem [thread:$0]  %s1, 32, %s34, [#allocation7]
    $region9: #{tpu_custom_call.1} parent=1 // pred_fallthru
      _
    // Predicated region
    $region10: #{tpu_custom_call.1} parent=1 // pred_check
      _
    $region11: #{tpu_custom_call.1} parent=1 // pred_check_branch
      %38 = sbr.rel (0) target = $region13
    $region12: #{tpu_custom_call.1} parent=1 // pred_region
      %s40 = ssub.s32 640, 640
      %41 = vsyncadd [#allocation7], %s40
      %s42 = sshll.u32 [#allocation8], 4
      %s43 = int_to_ptr.vmem [resolvable:$true] %s42
      %48 = dma.hbm_to_vmem [thread:$0]  %s2, 640, %s43, [#allocation7], 128, 128, 8
    $region13: #{tpu_custom_call.1} parent=1 // pred_fallthru
      _
    // Predicated region
    $region14: #{tpu_custom_call.1} parent=1 // pred_check
      _
    $region15: #{tpu_custom_call.1} parent=1 // pred_check_branch
      %50 = sbr.rel (0) target = $region17
    $region16: #{tpu_custom_call.1} parent=1 // pred_region
      _
    $region17: #{tpu_custom_call.1} parent=1 // pred_fallthru
      _
    // Predicated region
    $region18: #{tpu_custom_call.1} parent=1 // pred_check
      _
    $region19: #{tpu_custom_call.1} parent=1 // pred_check_branch
      %52 = sbr.rel (0) target = $region21
    $region20: #{tpu_custom_call.1} parent=1 // pred_region
      %s54 = ssub.s32 6144, 6144
      %55 = vsyncadd [#allocation10], %s54
      %s56 = sshll.u32 [#allocation9], 4
      %s57 = int_to_ptr.vmem [resolvable:$true] %s56
      %62 = dma.hbm_to_vmem [thread:$0]  %s4, 6144, %s57, [#allocation10], 384, 384, 24
    $region21: #{tpu_custom_call.1} parent=1 // pred_fallthru
      _
    // Predicated region
    $region22: #{tpu_custom_call.1} parent=1 // pred_check
      _
    $region23: #{tpu_custom_call.1} parent=1 // pred_check_branch
      %64 = sbr.rel (0) target = $region25
    $region24: #{tpu_custom_call.1} parent=1 // pred_region
      _
    $region25: #{tpu_custom_call.1} parent=1 // pred_fallthru
      _
    // Predicated region
    $region26: #{tpu_custom_call.1} parent=1 // pred_check
      _
    $region27: #{tpu_custom_call.1} parent=1 // pred_check_branch
      %66 = sbr.rel (0) target = $region29
    $region28: #{tpu_custom_call.1} parent=1 // pred_region
      %s68 = ssub.s32 6144, 6144
      %69 = vsyncadd [#allocation10], %s68
      %s70 = sshll.u32 [#allocation11], 4
      %s71 = int_to_ptr.vmem [resolvable:$true] %s70
      %76 = dma.hbm_to_vmem [thread:$0]  %s6, 6144, %s71, [#allocation10], 384, 384, 24
    $region29: #{tpu_custom_call.1} parent=1 // pred_fallthru
      _
    // Predicated region
    $region30: #{tpu_custom_call.1} parent=1 // pred_check
      _
    $region31: #{tpu_custom_call.1} parent=1 // pred_check_branch
      %78 = sbr.rel (0) target = $region33
    $region32: #{tpu_custom_call.1} parent=1 // pred_region
      _
    $region33: #{tpu_custom_call.1} parent=1 // pred_fallthru
      _
    // Predicated region
    $region34: #{tpu_custom_call.1} parent=1 // pred_check
      _
    $region35: #{tpu_custom_call.1} parent=1 // pred_check_branch
      %80 = sbr.rel (0) target = $region37
    $region36: #{tpu_custom_call.1} parent=1 // pred_region
      %81 = dma.done [#allocation4], 128
    $region37: #{tpu_custom_call.1} parent=1 // pred_fallthru
      _
    // Predicated region
    $region38: #{tpu_custom_call.1} parent=1 // pred_check
      _
    $region39: #{tpu_custom_call.1} parent=1 // pred_check_branch
      %83 = sbr.rel (0) target = $region41
    $region40: #{tpu_custom_call.1} parent=1 // pred_region
      %84 = dma.done [#allocation7], 32
    $region41: #{tpu_custom_call.1} parent=1 // pred_fallthru
      _
    // Predicated region
    $region42: #{tpu_custom_call.1} parent=1 // pred_check
      _
    $region43: #{tpu_custom_call.1} parent=1 // pred_check_branch
      %86 = sbr.rel (0) target = $region45
    $region44: #{tpu_custom_call.1} parent=1 // pred_region
      %87 = dma.done [#allocation7], 640
    $region45: #{tpu_custom_call.1} parent=1 // pred_fallthru
      _
    // Predicated region
    $region46: #{tpu_custom_call.1} parent=1 // pred_check
      _
    $region47: #{tpu_custom_call.1} parent=1 // pred_check_branch
      %89 = sbr.rel (0) target = $region49
    $region48: #{tpu_custom_call.1} parent=1 // pred_region
      %90 = dma.done [#allocation10], 6144
    $region49: #{tpu_custom_call.1} parent=1 // pred_fallthru
      _
    // Predicated region
    $region50: #{tpu_custom_call.1} parent=1 // pred_check
      _
    $region51: #{tpu_custom_call.1} parent=1 // pred_check_branch
      %92 = sbr.rel (0) target = $region53
    $region52: #{tpu_custom_call.1} parent=1 // pred_region
      %93 = dma.done [#allocation10], 6144
    $region53: #{tpu_custom_call.1} parent=1 // pred_fallthru
      _
    %p94 = scmp.eq.s32.totalorder 0, 0
    // Predicated region
    $region54: #{tpu_custom_call.1} parent=1 // pred_check
      %p95 = pneg %p94
    $region55: #{tpu_custom_call.1} parent=1 // pred_check_branch
      %97 = sbr.rel (%p95) target = $region57
    $region56: #{tpu_custom_call.1} parent=1 // pred_region
      %v98 = vld [vmem:[#allocation6] sm:$0x3]
      %99 = vst [vmem:[#allocation2] sm:$0x3] %v98
    $region57: #{tpu_custom_call.1} parent=1 // pred_fallthru
      _
    %v100 = vld [vmem:[#allocation3] sm:$0xff]
    %v101 = vld [vmem:[#allocation8] sm:$0xff]
    %v102 = vld [vmem:[#allocation8 + $0x8] sm:$0xff]
    %v103 = vld [vmem:[#allocation8 + $0x10] sm:$0xff]
    %v104 = vld [vmem:[#allocation8 + $0x18] sm:$0xff]
    %v105 = vld [vmem:[#allocation8 + $0x20] sm:$0x3f]
    %v106 = vld [vmem:[%s3] sm:$0x1]
    %v108 = vlaneseq
    %v109 = vshrl.u32 %v108, 7
    %v110 = vsub.s32 0, %v109
    %v111 = vrot.slane %v106, %v110
    %vm113 = vcmask 310272
    %v115 = vsel %vm113, %v100, 0
    %vm117 = vcmask 1045504
    %v119 = vsel %vm117, %v105, 0
    %121 = vmatprep.subr.mxu0 0.0
    %122 = vmatpush1.msra.mxu0 %v101
    %123 = vmatprep.subr.mxu0 0.0
    %124 = vmatpush1.msra.mxu0 %v102
    %125 = vmatprep.subr.mxu0 0.0
    %126 = vmatpush1.msra.mxu0 %v103
    %127 = vmatprep.subr.mxu0 0.0
    %128 = vmatpush1.msra.mxu0 %v104
    %129 = vmatprep.subr.mxu0 0.0
    %130 = vmatpush1.msra.mxu0 %v119
    %131 = vmatprep.subr.mxu0 0.0
    %132 = vmatpush1.msra.mxu0 0.0
    %133 = vmatprep.subr.mxu0 0.0
    %134 = vmatpush1.msra.mxu0 0.0
    %135 = vmatprep.subr.mxu0 0.0
    %136 = vmatpush1.msra.mxu0 0.0
    %137 = vmatprep.subr.mxu0 0.0
    %138 = vmatpush1.msra.mxu0 0.0
    %139 = vmatprep.subr.mxu0 0.0
    %140 = vmatpush1.msra.mxu0 0.0
    %141 = vmatprep.subr.mxu0 0.0
    %142 = vmatpush1.msra.mxu0 0.0
    %143 = vmatprep.subr.mxu0 0.0
    %144 = vmatpush1.msra.mxu0 0.0
    %145 = vmatprep.subr.mxu0 0.0
    %146 = vmatpush1.msra.mxu0 0.0
    %147 = vmatprep.subr.mxu0 0.0
    %148 = vmatpush1.msra.mxu0 0.0
    %149 = vmatprep.subr.mxu0 0.0
    %150 = vmatpush1.msra.mxu0 0.0
    %151 = vmatprep.subr.mxu0 0.0
    %152 = vmatpush1.msra.mxu0 0.0
    %153 = vmatprep.subr.mxu0 0.0
    %154 = vmatpush1.msra.mxu0 0.0
    %155 = vmatprep.subr.mxu0 0.0
    %156 = vmatpush1.msra.mxu0 0.0
    %157 = vmatprep.subr.mxu0 0.0
    %158 = vmatpush1.msra.mxu0 0.0
    %159 = vmatprep.subr.mxu0 0.0
    %160 = vmatpush1.msra.mxu0 0.0
    %161 = vmatprep.subr.mxu0 0.0
    %162 = vmatpush1.msra.mxu0 0.0
    %163 = vmatprep.subr.mxu0 0.0
    %164 = vmatpush1.msra.mxu0 0.0
    %165 = vmatprep.subr.mxu0 0.0
    %166 = vmatpush1.msra.mxu0 0.0
    %167 = vmatprep.subr.mxu0 0.0
    %168 = vmatpush1.msra.mxu0 0.0
    %169 = vmatprep.subr.mxu0 0.0
    %170 = vmatpush1.msra.mxu0 0.0
    %171 = vmatprep.subr.mxu0 0.0
    %172 = vmatpush1.msra.mxu0 0.0
    %173 = vmatprep.subr.mxu0 0.0
    %174 = vmatpush1.msra.mxu0 0.0
    %175 = vmatprep.subr.mxu0 0.0
    %176 = vmatpush1.msra.mxu0 0.0
    %177 = vmatprep.subr.mxu0 0.0
    %178 = vmatpush1.msra.mxu0 0.0
    %179 = vmatprep.subr.mxu0 0.0
    %180 = vmatpush1.msra.mxu0 0.0
    %181 = vmatprep.subr.mxu0 0.0
    %182 = vmatpush1.msra.mxu0 0.0
    %183 = vmatprep.subr.mxu0 0.0
    %184 = vmatpush1.msra.mxu0 0.0
    %185 = vmatprep.mubr.f32.mxu0 0.0
    %186 = vmatmul.mubr.f32.gmra.mrb[0].mxu0 %v115
    %v187 = vpop.f32.mrb[0].mxu0
    %v188 = vadd.f32 %v111, %v187
    %v189 = vpop.f32.mrb[0].mxu0
    %190 = vdwg.mxu0
    %vm191 = vcmp.gt.f32.partialorder %v188, 0.0
    %v192 = vmin.f32 %v188, 0.0
    %v193 = vmul.f32 %v192, 1.442695
    %v194 = vpow.pop %v193
    %v195 = vsub.f32 %v194, 1.0
    %v196 = vsel %vm191, %v188, %v195
    %v197 = vld [vmem:[#allocation9] sm:$0xff]
    %v198 = vld [vmem:[#allocation9 + $0x8] sm:$0xff]
    %v199 = vld [vmem:[#allocation9 + $0x10] sm:$0xff]
    %v200 = vld [vmem:[#allocation9 + $0x18] sm:$0xff]
    %v201 = vld [vmem:[#allocation9 + $0x20] sm:$0xff]
    %v202 = vld [vmem:[#allocation9 + $0x28] sm:$0xff]
    %v203 = vld [vmem:[#allocation9 + $0x30] sm:$0xff]
    %v204 = vld [vmem:[#allocation9 + $0x38] sm:$0xff]
    %v205 = vld [vmem:[#allocation9 + $0x40] sm:$0xff]
    %v206 = vld [vmem:[#allocation9 + $0x48] sm:$0xff]
    %v207 = vld [vmem:[#allocation9 + $0x50] sm:$0xff]
    %v208 = vld [vmem:[#allocation9 + $0x58] sm:$0xff]
    %v209 = vld [vmem:[#allocation9 + $0x60] sm:$0xff]
    %v210 = vld [vmem:[#allocation9 + $0x68] sm:$0xff]
    %v211 = vld [vmem:[#allocation9 + $0x70] sm:$0xff]
    %v212 = vld [vmem:[#allocation9 + $0x78] sm:$0xff]
    %v213 = vld [vmem:[#allocation9 + $0x80] sm:$0xff]
    %v214 = vld [vmem:[#allocation9 + $0x88] sm:$0xff]
    %v215 = vld [vmem:[#allocation9 + $0x90] sm:$0xff]
    %v216 = vld [vmem:[#allocation9 + $0x98] sm:$0xff]
    %v217 = vld [vmem:[#allocation9 + $0xa0] sm:$0xff]
    %v218 = vld [vmem:[#allocation9 + $0xa8] sm:$0xff]
    %v219 = vld [vmem:[#allocation9 + $0xb0] sm:$0xff]
    %v220 = vld [vmem:[#allocation9 + $0xb8] sm:$0xff]
    %v221 = vld [vmem:[#allocation9 + $0xc0] sm:$0xff]
    %v222 = vld [vmem:[#allocation9 + $0xc8] sm:$0xff]
    %v223 = vld [vmem:[#allocation9 + $0xd0] sm:$0xff]
    %v224 = vld [vmem:[#allocation9 + $0xd8] sm:$0xff]
    %v225 = vld [vmem:[#allocation9 + $0xe0] sm:$0xff]
    %v226 = vld [vmem:[#allocation9 + $0xe8] sm:$0xff]
    %v227 = vld [vmem:[#allocation9 + $0xf0] sm:$0xff]
    %v228 = vld [vmem:[#allocation9 + $0xf8] sm:$0xff]
    %v229 = vld [vmem:[#allocation9 + $0x100] sm:$0xff]
    %v230 = vld [vmem:[#allocation9 + $0x108] sm:$0xff]
    %v231 = vld [vmem:[#allocation9 + $0x110] sm:$0xff]
    %v232 = vld [vmem:[#allocation9 + $0x118] sm:$0xff]
    %v233 = vld [vmem:[#allocation9 + $0x120] sm:$0xff]
    %v234 = vld [vmem:[#allocation9 + $0x128] sm:$0xff]
    %v235 = vld [vmem:[#allocation9 + $0x130] sm:$0xff]
    %v236 = vld [vmem:[#allocation9 + $0x138] sm:$0xff]
    %v237 = vld [vmem:[#allocation9 + $0x140] sm:$0xff]
    %v238 = vld [vmem:[#allocation9 + $0x148] sm:$0xff]
    %v239 = vld [vmem:[#allocation9 + $0x150] sm:$0xff]
    %v240 = vld [vmem:[#allocation9 + $0x158] sm:$0xff]
    %v241 = vld [vmem:[#allocation9 + $0x160] sm:$0xff]
    %v242 = vld [vmem:[#allocation9 + $0x168] sm:$0xff]
    %v243 = vld [vmem:[#allocation9 + $0x170] sm:$0xff]
    %v244 = vld [vmem:[#allocation9 + $0x178] sm:$0xff]
    %v245 = vld [vmem:[%s5] sm:$0x7]
    %v247 = vlaneseq
    %v248 = vshrl.u32 %v247, 7
    %v249 = vsub.s32 0, %v248
    %v250 = vrot.slane %v245, %v249
    %v251 = vlaneseq
    %v252 = vshrl.u32 %v251, 7
    %v253 = vsub.s32 1, %v252
    %v254 = vrot.slane %v245, %v253
    %v255 = vlaneseq
    %v256 = vshrl.u32 %v255, 7
    %v257 = vsub.s32 2, %v256
    %v258 = vrot.slane %v245, %v257
    %262 = vmatprep.subr.mxu0 %v198
    %263 = vmatpush1.msra.mxu0 %v197
    %264 = vmatprep.subr.mxu0 %v201
    %265 = vmatpush1.msra.mxu0 %v200
    %266 = vmatprep.subr.mxu0 %v204
    %267 = vmatpush1.msra.mxu0 %v203
    %268 = vmatprep.subr.mxu0 %v207
    %269 = vmatpush1.msra.mxu0 %v206
    %270 = vmatprep.subr.mxu0 %v210
    %271 = vmatpush1.msra.mxu0 %v209
    %272 = vmatprep.subr.mxu0 %v213
    %273 = vmatpush1.msra.mxu0 %v212
    %274 = vmatprep.subr.mxu0 %v216
    %275 = vmatpush1.msra.mxu0 %v215
    %276 = vmatprep.subr.mxu0 %v219
    %277 = vmatpush1.msra.mxu0 %v218
    %278 = vmatprep.subr.mxu0 %v222
    %279 = vmatpush1.msra.mxu0 %v221
    %280 = vmatprep.subr.mxu0 %v225
    %281 = vmatpush1.msra.mxu0 %v224
    %282 = vmatprep.subr.mxu0 %v228
    %283 = vmatpush1.msra.mxu0 %v227
    %284 = vmatprep.subr.mxu0 %v231
    %285 = vmatpush1.msra.mxu0 %v230
    %286 = vmatprep.subr.mxu0 %v234
    %287 = vmatpush1.msra.mxu0 %v233
    %288 = vmatprep.subr.mxu0 %v237
    %289 = vmatpush1.msra.mxu0 %v236
    %290 = vmatprep.subr.mxu0 %v240
    %291 = vmatpush1.msra.mxu0 %v239
    %292 = vmatprep.subr.mxu0 %v243
    %293 = vmatpush1.msra.mxu0 %v242
    %294 = vmatprep.subr.mxu0 0.0
    %295 = vmatpush1.msra.mxu0 0.0
    %296 = vmatprep.subr.mxu0 0.0
    %297 = vmatpush1.msra.mxu0 0.0
    %298 = vmatprep.subr.mxu0 0.0
    %299 = vmatpush1.msra.mxu0 0.0
    %300 = vmatprep.subr.mxu0 0.0
    %301 = vmatpush1.msra.mxu0 0.0
    %302 = vmatprep.subr.mxu0 0.0
    %303 = vmatpush1.msra.mxu0 0.0
    %304 = vmatprep.subr.mxu0 0.0
    %305 = vmatpush1.msra.mxu0 0.0
    %306 = vmatprep.subr.mxu0 0.0
    %307 = vmatpush1.msra.mxu0 0.0
    %308 = vmatprep.subr.mxu0 0.0
    %309 = vmatpush1.msra.mxu0 0.0
    %310 = vmatprep.subr.mxu0 0.0
    %311 = vmatpush1.msra.mxu0 0.0
    %312 = vmatprep.subr.mxu0 0.0
    %313 = vmatpush1.msra.mxu0 0.0
    %314 = vmatprep.subr.mxu0 0.0
    %315 = vmatpush1.msra.mxu0 0.0
    %316 = vmatprep.subr.mxu0 0.0
    %317 = vmatpush1.msra.mxu0 0.0
    %318 = vmatprep.subr.mxu0 0.0
    %319 = vmatpush1.msra.mxu0 0.0
    %320 = vmatprep.subr.mxu0 0.0
    %321 = vmatpush1.msra.mxu0 0.0
    %322 = vmatprep.subr.mxu0 0.0
    %323 = vmatpush1.msra.mxu0 0.0
    %324 = vmatprep.subr.mxu0 0.0
    %325 = vmatpush1.msra.mxu0 0.0
    %326 = vmatprep.mubr.f32.mxu0 0.0
    %327 = vmatmul.mubr.f32.gmra.mrb[0].mxu0 %v196
    %v328 = vpop.f32.mrb[0].mxu0
    %v329 = vadd.f32 %v250, %v328
    %v330 = vpop.f32.mrb[0].mxu0
    %v331 = vadd.f32 %v254, %v330
    %332 = vdwg.mxu0
    %333 = vmatprep.subr.mxu0 0.0
    %334 = vmatpush1.msra.mxu0 %v199
    %335 = vmatprep.subr.mxu0 0.0
    %336 = vmatpush1.msra.mxu0 %v202
    %337 = vmatprep.subr.mxu0 0.0
    %338 = vmatpush1.msra.mxu0 %v205
    %339 = vmatprep.subr.mxu0 0.0
    %340 = vmatpush1.msra.mxu0 %v208
    %341 = vmatprep.subr.mxu0 0.0
    %342 = vmatpush1.msra.mxu0 %v211
    %343 = vmatprep.subr.mxu0 0.0
    %344 = vmatpush1.msra.mxu0 %v214
    %345 = vmatprep.subr.mxu0 0.0
    %346 = vmatpush1.msra.mxu0 %v217
    %347 = vmatprep.subr.mxu0 0.0
    %348 = vmatpush1.msra.mxu0 %v220
    %349 = vmatprep.subr.mxu0 0.0
    %350 = vmatpush1.msra.mxu0 %v223
    %351 = vmatprep.subr.mxu0 0.0
    %352 = vmatpush1.msra.mxu0 %v226
    %353 = vmatprep.subr.mxu0 0.0
    %354 = vmatpush1.msra.mxu0 %v229
    %355 = vmatprep.subr.mxu0 0.0
    %356 = vmatpush1.msra.mxu0 %v232
    %357 = vmatprep.subr.mxu0 0.0
    %358 = vmatpush1.msra.mxu0 %v235
    %359 = vmatprep.subr.mxu0 0.0
    %360 = vmatpush1.msra.mxu0 %v238
    %361 = vmatprep.subr.mxu0 0.0
    %362 = vmatpush1.msra.mxu0 %v241
    %363 = vmatprep.subr.mxu0 0.0
    %364 = vmatpush1.msra.mxu0 %v244
    %365 = vmatprep.subr.mxu0 0.0
    %366 = vmatpush1.msra.mxu0 0.0
    %367 = vmatprep.subr.mxu0 0.0
    %368 = vmatpush1.msra.mxu0 0.0
    %369 = vmatprep.subr.mxu0 0.0
    %370 = vmatpush1.msra.mxu0 0.0
    %371 = vmatprep.subr.mxu0 0.0
    %372 = vmatpush1.msra.mxu0 0.0
    %373 = vmatprep.subr.mxu0 0.0
    %374 = vmatpush1.msra.mxu0 0.0
    %375 = vmatprep.subr.mxu0 0.0
    %376 = vmatpush1.msra.mxu0 0.0
    %377 = vmatprep.subr.mxu0 0.0
    %378 = vmatpush1.msra.mxu0 0.0
    %379 = vmatprep.subr.mxu0 0.0
    %380 = vmatpush1.msra.mxu0 0.0
    %381 = vmatprep.subr.mxu0 0.0
    %382 = vmatpush1.msra.mxu0 0.0
    %383 = vmatprep.subr.mxu0 0.0
    %384 = vmatpush1.msra.mxu0 0.0
    %385 = vmatprep.subr.mxu0 0.0
    %386 = vmatpush1.msra.mxu0 0.0
    %387 = vmatprep.subr.mxu0 0.0
    %388 = vmatpush1.msra.mxu0 0.0
    %389 = vmatprep.subr.mxu0 0.0
    %390 = vmatpush1.msra.mxu0 0.0
    %391 = vmatprep.subr.mxu0 0.0
    %392 = vmatpush1.msra.mxu0 0.0
    %393 = vmatprep.subr.mxu0 0.0
    %394 = vmatpush1.msra.mxu0 0.0
    %395 = vmatprep.subr.mxu0 0.0
    %396 = vmatpush1.msra.mxu0 0.0
    %397 = vmatprep.mubr.f32.mxu0 0.0
    %398 = vmatmul.mubr.f32.gmra.mrb[0].mxu0 %v196
    %v399 = vpop.f32.mrb[0].mxu0
    %v400 = vadd.f32 %v258, %v399
    %v401 = vpop.f32.mrb[0].mxu0
    %402 = vdwg.mxu0
    %v403 = vld [vmem:[#allocation2] sm:$0x3]
    %v404 = vld [vmem:[#allocation11] sm:$0xff]
    %v405 = vld [vmem:[#allocation11 + $0x8] sm:$0xff]
    %v406 = vld [vmem:[#allocation11 + $0x10] sm:$0xff]
    %v407 = vld [vmem:[#allocation11 + $0x18] sm:$0xff]
    %v408 = vld [vmem:[#allocation11 + $0x20] sm:$0xff]
    %v409 = vld [vmem:[#allocation11 + $0x28] sm:$0xff]
    %v410 = vld [vmem:[#allocation11 + $0x30] sm:$0xff]
    %v411 = vld [vmem:[#allocation11 + $0x38] sm:$0xff]
    %v412 = vld [vmem:[#allocation11 + $0x40] sm:$0xff]
    %v413 = vld [vmem:[#allocation11 + $0x48] sm:$0xff]
    %v414 = vld [vmem:[#allocation11 + $0x50] sm:$0xff]
    %v415 = vld [vmem:[#allocation11 + $0x58] sm:$0xff]
    %v416 = vld [vmem:[#allocation11 + $0x60] sm:$0xff]
    %v417 = vld [vmem:[#allocation11 + $0x68] sm:$0xff]
    %v418 = vld [vmem:[#allocation11 + $0x70] sm:$0xff]
    %v419 = vld [vmem:[#allocation11 + $0x78] sm:$0xff]
    %v420 = vld [vmem:[#allocation11 + $0x80] sm:$0xff]
    %v421 = vld [vmem:[#allocation11 + $0x88] sm:$0xff]
    %v422 = vld [vmem:[#allocation11 + $0x90] sm:$0xff]
    %v423 = vld [vmem:[#allocation11 + $0x98] sm:$0xff]
    %v424 = vld [vmem:[#allocation11 + $0xa0] sm:$0xff]
    %v425 = vld [vmem:[#allocation11 + $0xa8] sm:$0xff]
    %v426 = vld [vmem:[#allocation11 + $0xb0] sm:$0xff]
    %v427 = vld [vmem:[#allocation11 + $0xb8] sm:$0xff]
    %v428 = vld [vmem:[#allocation11 + $0xc0] sm:$0xff]
    %v429 = vld [vmem:[#allocation11 + $0xc8] sm:$0xff]
    %v430 = vld [vmem:[#allocation11 + $0xd0] sm:$0xff]
    %v431 = vld [vmem:[#allocation11 + $0xd8] sm:$0xff]
    %v432 = vld [vmem:[#allocation11 + $0xe0] sm:$0xff]
    %v433 = vld [vmem:[#allocation11 + $0xe8] sm:$0xff]
    %v434 = vld [vmem:[#allocation11 + $0xf0] sm:$0xff]
    %v435 = vld [vmem:[#allocation11 + $0xf8] sm:$0xff]
    %v436 = vld [vmem:[#allocation11 + $0x100] sm:$0xff]
    %v437 = vld [vmem:[#allocation11 + $0x108] sm:$0xff]
    %v438 = vld [vmem:[#allocation11 + $0x110] sm:$0xff]
    %v439 = vld [vmem:[#allocation11 + $0x118] sm:$0xff]
    %v440 = vld [vmem:[#allocation11 + $0x120] sm:$0xff]
    %v441 = vld [vmem:[#allocation11 + $0x128] sm:$0xff]
    %v442 = vld [vmem:[#allocation11 + $0x130] sm:$0xff]
    %v443 = vld [vmem:[#allocation11 + $0x138] sm:$0xff]
    %v444 = vld [vmem:[#allocation11 + $0x140] sm:$0xff]
    %v445 = vld [vmem:[#allocation11 + $0x148] sm:$0xff]
    %v446 = vld [vmem:[#allocation11 + $0x150] sm:$0xff]
    %v447 = vld [vmem:[#allocation11 + $0x158] sm:$0xff]
    %v448 = vld [vmem:[#allocation11 + $0x160] sm:$0xff]
    %v449 = vld [vmem:[#allocation11 + $0x168] sm:$0xff]
    %v450 = vld [vmem:[#allocation11 + $0x170] sm:$0xff]
    %v451 = vld [vmem:[#allocation11 + $0x178] sm:$0xff]
    %v452 = vld [vmem:[%s7] sm:$0x7]
    %v454 = vlaneseq
    %v455 = vshrl.u32 %v454, 7
    %v456 = vsub.s32 0, %v455
    %v457 = vrot.slane %v452, %v456
    %v458 = vlaneseq
    %v459 = vshrl.u32 %v458, 7
    %v460 = vsub.s32 1, %v459
    %v461 = vrot.slane %v452, %v460
    %v462 = vlaneseq
    %v463 = vshrl.u32 %v462, 7
    %v464 = vsub.s32 2, %v463
    %v465 = vrot.slane %v452, %v464
    %469 = vmatprep.subr.mxu0 %v405
    %470 = vmatpush1.msra.mxu0 %v404
    %471 = vmatprep.subr.mxu0 %v408
    %472 = vmatpush1.msra.mxu0 %v407
    %473 = vmatprep.subr.mxu0 %v411
    %474 = vmatpush1.msra.mxu0 %v410
    %475 = vmatprep.subr.mxu0 %v414
    %476 = vmatpush1.msra.mxu0 %v413
    %477 = vmatprep.subr.mxu0 %v417
    %478 = vmatpush1.msra.mxu0 %v416
    %479 = vmatprep.subr.mxu0 %v420
    %480 = vmatpush1.msra.mxu0 %v419
    %481 = vmatprep.subr.mxu0 %v423
    %482 = vmatpush1.msra.mxu0 %v422
    %483 = vmatprep.subr.mxu0 %v426
    %484 = vmatpush1.msra.mxu0 %v425
    %485 = vmatprep.subr.mxu0 %v429
    %486 = vmatpush1.msra.mxu0 %v428
    %487 = vmatprep.subr.mxu0 %v432
    %488 = vmatpush1.msra.mxu0 %v431
    %489 = vmatprep.subr.mxu0 %v435
    %490 = vmatpush1.msra.mxu0 %v434
    %491 = vmatprep.subr.mxu0 %v438
    %492 = vmatpush1.msra.mxu0 %v437
    %493 = vmatprep.subr.mxu0 %v441
    %494 = vmatpush1.msra.mxu0 %v440
    %495 = vmatprep.subr.mxu0 %v444
    %496 = vmatpush1.msra.mxu0 %v443
    %497 = vmatprep.subr.mxu0 %v447
    %498 = vmatpush1.msra.mxu0 %v446
    %499 = vmatprep.subr.mxu0 %v450
    %500 = vmatpush1.msra.mxu0 %v449
    %501 = vmatprep.subr.mxu0 0.0
    %502 = vmatpush1.msra.mxu0 0.0
    %503 = vmatprep.subr.mxu0 0.0
    %504 = vmatpush1.msra.mxu0 0.0
    %505 = vmatprep.subr.mxu0 0.0
    %506 = vmatpush1.msra.mxu0 0.0
    %507 = vmatprep.subr.mxu0 0.0
    %508 = vmatpush1.msra.mxu0 0.0
    %509 = vmatprep.subr.mxu0 0.0
    %510 = vmatpush1.msra.mxu0 0.0
    %511 = vmatprep.subr.mxu0 0.0
    %512 = vmatpush1.msra.mxu0 0.0
    %513 = vmatprep.subr.mxu0 0.0
    %514 = vmatpush1.msra.mxu0 0.0
    %515 = vmatprep.subr.mxu0 0.0
    %516 = vmatpush1.msra.mxu0 0.0
    %517 = vmatprep.subr.mxu0 0.0
    %518 = vmatpush1.msra.mxu0 0.0
    %519 = vmatprep.subr.mxu0 0.0
    %520 = vmatpush1.msra.mxu0 0.0
    %521 = vmatprep.subr.mxu0 0.0
    %522 = vmatpush1.msra.mxu0 0.0
    %523 = vmatprep.subr.mxu0 0.0
    %524 = vmatpush1.msra.mxu0 0.0
    %525 = vmatprep.subr.mxu0 0.0
    %526 = vmatpush1.msra.mxu0 0.0
    %527 = vmatprep.subr.mxu0 0.0
    %528 = vmatpush1.msra.mxu0 0.0
    %529 = vmatprep.subr.mxu0 0.0
    %530 = vmatpush1.msra.mxu0 0.0
    %531 = vmatprep.subr.mxu0 0.0
    %532 = vmatpush1.msra.mxu0 0.0
    %533 = vmatprep.mubr.f32.mxu0 0.0
    %534 = vmatmul.mubr.f32.gmra.mrb[0].mxu0 %v403
    %v535 = vpop.f32.mrb[0].mxu0
    %v536 = vadd.f32 %v457, %v535
    %v537 = vpop.f32.mrb[0].mxu0
    %v538 = vadd.f32 %v461, %v537
    %539 = vdwg.mxu0
    %540 = vmatprep.subr.mxu0 0.0
    %541 = vmatpush1.msra.mxu0 %v406
    %542 = vmatprep.subr.mxu0 0.0
    %543 = vmatpush1.msra.mxu0 %v409
    %544 = vmatprep.subr.mxu0 0.0
    %545 = vmatpush1.msra.mxu0 %v412
    %546 = vmatprep.subr.mxu0 0.0
    %547 = vmatpush1.msra.mxu0 %v415
    %548 = vmatprep.subr.mxu0 0.0
    %549 = vmatpush1.msra.mxu0 %v418
    %550 = vmatprep.subr.mxu0 0.0
    %551 = vmatpush1.msra.mxu0 %v421
    %552 = vmatprep.subr.mxu0 0.0
    %553 = vmatpush1.msra.mxu0 %v424
    %554 = vmatprep.subr.mxu0 0.0
    %555 = vmatpush1.msra.mxu0 %v427
    %556 = vmatprep.subr.mxu0 0.0
    %557 = vmatpush1.msra.mxu0 %v430
    %558 = vmatprep.subr.mxu0 0.0
    %559 = vmatpush1.msra.mxu0 %v433
    %560 = vmatprep.subr.mxu0 0.0
    %561 = vmatpush1.msra.mxu0 %v436
    %562 = vmatprep.subr.mxu0 0.0
    %563 = vmatpush1.msra.mxu0 %v439
    %564 = vmatprep.subr.mxu0 0.0
    %565 = vmatpush1.msra.mxu0 %v442
    %566 = vmatprep.subr.mxu0 0.0
    %567 = vmatpush1.msra.mxu0 %v445
    %568 = vmatprep.subr.mxu0 0.0
    %569 = vmatpush1.msra.mxu0 %v448
    %570 = vmatprep.subr.mxu0 0.0
    %571 = vmatpush1.msra.mxu0 %v451
    %572 = vmatprep.subr.mxu0 0.0
    %573 = vmatpush1.msra.mxu0 0.0
    %574 = vmatprep.subr.mxu0 0.0
    %575 = vmatpush1.msra.mxu0 0.0
    %576 = vmatprep.subr.mxu0 0.0
    %577 = vmatpush1.msra.mxu0 0.0
    %578 = vmatprep.subr.mxu0 0.0
    %579 = vmatpush1.msra.mxu0 0.0
    %580 = vmatprep.subr.mxu0 0.0
    %581 = vmatpush1.msra.mxu0 0.0
    %582 = vmatprep.subr.mxu0 0.0
    %583 = vmatpush1.msra.mxu0 0.0
    %584 = vmatprep.subr.mxu0 0.0
    %585 = vmatpush1.msra.mxu0 0.0
    %586 = vmatprep.subr.mxu0 0.0
    %587 = vmatpush1.msra.mxu0 0.0
    %588 = vmatprep.subr.mxu0 0.0
    %589 = vmatpush1.msra.mxu0 0.0
    %590 = vmatprep.subr.mxu0 0.0
    %591 = vmatpush1.msra.mxu0 0.0
    %592 = vmatprep.subr.mxu0 0.0
    %593 = vmatpush1.msra.mxu0 0.0
    %594 = vmatprep.subr.mxu0 0.0
    %595 = vmatpush1.msra.mxu0 0.0
    %596 = vmatprep.subr.mxu0 0.0
    %597 = vmatpush1.msra.mxu0 0.0
    %598 = vmatprep.subr.mxu0 0.0
    %599 = vmatpush1.msra.mxu0 0.0
    %600 = vmatprep.subr.mxu0 0.0
    %601 = vmatpush1.msra.mxu0 0.0
    %602 = vmatprep.subr.mxu0 0.0
    %603 = vmatpush1.msra.mxu0 0.0
    %604 = vmatprep.mubr.f32.mxu0 0.0
    %605 = vmatmul.mubr.f32.gmra.mrb[0].mxu0 %v403
    %v606 = vpop.f32.mrb[0].mxu0
    %v607 = vadd.f32 %v465, %v606
    %v608 = vpop.f32.mrb[0].mxu0
    %609 = vdwg.mxu0
    %v610 = vadd.f32 %v329, %v536
    %v611 = vxor.u32 %v610, 2147483648
    %v612 = vmul.f32 %v611, 1.442695
    %v613 = vpow.pop %v612
    %v614 = vadd.f32 %v613, 1.0
    %v615 = vrcp.pop %v614
    %v616 = vmul.f32 1.0, %v615
    %v617 = vadd.f32 %v331, %v538
    %v618 = vxor.u32 %v617, 2147483648
    %v619 = vmul.f32 %v618, 1.442695
    %v620 = vpow.pop %v619
    %v621 = vadd.f32 %v620, 1.0
    %v622 = vrcp.pop %v621
    %v623 = vmul.f32 1.0, %v622
    %v624 = vmul.f32 %v616, %v607
    %v625 = vadd.f32 %v400, %v624
    %v626 = vtanh.pop %v625
    %v627 = vsub.f32 1.0, %v623
    %v628 = vmul.f32 %v627, %v626
    %v629 = vmul.f32 %v623, %v403
    %v630 = vadd.f32 %v628, %v629
    %631 = vmatprep.subr.mxu0 %v405
    %632 = vmatpush1.msra.mxu0 %v404
    %633 = vmatprep.subr.mxu0 %v408
    %634 = vmatpush1.msra.mxu0 %v407
    %635 = vmatprep.subr.mxu0 %v411
    %636 = vmatpush1.msra.mxu0 %v410
    %637 = vmatprep.subr.mxu0 %v414
    %638 = vmatpush1.msra.mxu0 %v413
    %639 = vmatprep.subr.mxu0 %v417
    %640 = vmatpush1.msra.mxu0 %v416
    %641 = vmatprep.subr.mxu0 %v420
    %642 = vmatpush1.msra.mxu0 %v419
    %643 = vmatprep.subr.mxu0 %v423
    %644 = vmatpush1.msra.mxu0 %v422
    %645 = vmatprep.subr.mxu0 %v426
    %646 = vmatpush1.msra.mxu0 %v425
    %647 = vmatprep.subr.mxu0 %v429
    %648 = vmatpush1.msra.mxu0 %v428
    %649 = vmatprep.subr.mxu0 %v432
    %650 = vmatpush1.msra.mxu0 %v431
    %651 = vmatprep.subr.mxu0 %v435
    %652 = vmatpush1.msra.mxu0 %v434
    %653 = vmatprep.subr.mxu0 %v438
    %654 = vmatpush1.msra.mxu0 %v437
    %655 = vmatprep.subr.mxu0 %v441
    %656 = vmatpush1.msra.mxu0 %v440
    %657 = vmatprep.subr.mxu0 %v444
    %658 = vmatpush1.msra.mxu0 %v443
    %659 = vmatprep.subr.mxu0 %v447
    %660 = vmatpush1.msra.mxu0 %v446
    %661 = vmatprep.subr.mxu0 %v450
    %662 = vmatpush1.msra.mxu0 %v449
    %663 = vmatprep.subr.mxu0 0.0
    %664 = vmatpush1.msra.mxu0 0.0
    %665 = vmatprep.subr.mxu0 0.0
    %666 = vmatpush1.msra.mxu0 0.0
    %667 = vmatprep.subr.mxu0 0.0
    %668 = vmatpush1.msra.mxu0 0.0
    %669 = vmatprep.subr.mxu0 0.0
    %670 = vmatpush1.msra.mxu0 0.0
    %671 = vmatprep.subr.mxu0 0.0
    %672 = vmatpush1.msra.mxu0 0.0
    %673 = vmatprep.subr.mxu0 0.0
    %674 = vmatpush1.msra.mxu0 0.0
    %675 = vmatprep.subr.mxu0 0.0
    %676 = vmatpush1.msra.mxu0 0.0
    %677 = vmatprep.subr.mxu0 0.0
    %678 = vmatpush1.msra.mxu0 0.0
    %679 = vmatprep.subr.mxu0 0.0
    %680 = vmatpush1.msra.mxu0 0.0
    %681 = vmatprep.subr.mxu0 0.0
    %682 = vmatpush1.msra.mxu0 0.0
    %683 = vmatprep.subr.mxu0 0.0
    %684 = vmatpush1.msra.mxu0 0.0
    %685 = vmatprep.subr.mxu0 0.0
    %686 = vmatpush1.msra.mxu0 0.0
    %687 = vmatprep.subr.mxu0 0.0
    %688 = vmatpush1.msra.mxu0 0.0
    %689 = vmatprep.subr.mxu0 0.0
    %690 = vmatpush1.msra.mxu0 0.0
    %691 = vmatprep.subr.mxu0 0.0
    %692 = vmatpush1.msra.mxu0 0.0
    %693 = vmatprep.subr.mxu0 0.0
    %694 = vmatpush1.msra.mxu0 0.0
    %695 = vmatprep.mubr.f32.mxu0 0.0
    %696 = vmatmul.mubr.f32.gmra.mrb[0].mxu0 %v630
    %v697 = vpop.f32.mrb[0].mxu0
    %v698 = vadd.f32 %v457, %v697
    %v699 = vpop.f32.mrb[0].mxu0
    %v700 = vadd.f32 %v461, %v699
    %701 = vdwg.mxu0
    %702 = vmatprep.subr.mxu0 0.0
    %703 = vmatpush1.msra.mxu0 %v406
    %704 = vmatprep.subr.mxu0 0.0
    %705 = vmatpush1.msra.mxu0 %v409
    %706 = vmatprep.subr.mxu0 0.0
    %707 = vmatpush1.msra.mxu0 %v412
    %708 = vmatprep.subr.mxu0 0.0
    %709 = vmatpush1.msra.mxu0 %v415
    %710 = vmatprep.subr.mxu0 0.0
    %711 = vmatpush1.msra.mxu0 %v418
    %712 = vmatprep.subr.mxu0 0.0
    %713 = vmatpush1.msra.mxu0 %v421
    %714 = vmatprep.subr.mxu0 0.0
    %715 = vmatpush1.msra.mxu0 %v424
    %716 = vmatprep.subr.mxu0 0.0
    %717 = vmatpush1.msra.mxu0 %v427
    %718 = vmatprep.subr.mxu0 0.0
    %719 = vmatpush1.msra.mxu0 %v430
    %720 = vmatprep.subr.mxu0 0.0
    %721 = vmatpush1.msra.mxu0 %v433
    %722 = vmatprep.subr.mxu0 0.0
    %723 = vmatpush1.msra.mxu0 %v436
    %724 = vmatprep.subr.mxu0 0.0
    %725 = vmatpush1.msra.mxu0 %v439
    %726 = vmatprep.subr.mxu0 0.0
    %727 = vmatpush1.msra.mxu0 %v442
    %728 = vmatprep.subr.mxu0 0.0
    %729 = vmatpush1.msra.mxu0 %v445
    %730 = vmatprep.subr.mxu0 0.0
    %731 = vmatpush1.msra.mxu0 %v448
    %732 = vmatprep.subr.mxu0 0.0
    %733 = vmatpush1.msra.mxu0 %v451
    %734 = vmatprep.subr.mxu0 0.0
    %735 = vmatpush1.msra.mxu0 0.0
    %736 = vmatprep.subr.mxu0 0.0
    %737 = vmatpush1.msra.mxu0 0.0
    %738 = vmatprep.subr.mxu0 0.0
    %739 = vmatpush1.msra.mxu0 0.0
    %740 = vmatprep.subr.mxu0 0.0
    %741 = vmatpush1.msra.mxu0 0.0
    %742 = vmatprep.subr.mxu0 0.0
    %743 = vmatpush1.msra.mxu0 0.0
    %744 = vmatprep.subr.mxu0 0.0
    %745 = vmatpush1.msra.mxu0 0.0
    %746 = vmatprep.subr.mxu0 0.0
    %747 = vmatpush1.msra.mxu0 0.0
    %748 = vmatprep.subr.mxu0 0.0
    %749 = vmatpush1.msra.mxu0 0.0
    %750 = vmatprep.subr.mxu0 0.0
    %751 = vmatpush1.msra.mxu0 0.0
    %752 = vmatprep.subr.mxu0 0.0
    %753 = vmatpush1.msra.mxu0 0.0
    %754 = vmatprep.subr.mxu0 0.0
    %755 = vmatpush1.msra.mxu0 0.0
    %756 = vmatprep.subr.mxu0 0.0
    %757 = vmatpush1.msra.mxu0 0.0
    %758 = vmatprep.subr.mxu0 0.0
    %759 = vmatpush1.msra.mxu0 0.0
    %760 = vmatprep.subr.mxu0 0.0
    %761 = vmatpush1.msra.mxu0 0.0
    %762 = vmatprep.subr.mxu0 0.0
    %763 = vmatpush1.msra.mxu0 0.0
    %764 = vmatprep.subr.mxu0 0.0
    %765 = vmatpush1.msra.mxu0 0.0
    %766 = vmatprep.mubr.f32.mxu0 0.0
    %767 = vmatmul.mubr.f32.gmra.mrb[0].mxu0 %v630
    %v768 = vpop.f32.mrb[0].mxu0
    %v769 = vadd.f32 %v465, %v768
    %v770 = vpop.f32.mrb[0].mxu0
    %771 = vdwg.mxu0
    %v773 = vrot.slane %v698, 6
    %v775 = vadd.f32 %v329, %v773
    %v776 = vxor.u32 %v775, 2147483648
    %v777 = vmul.f32 %v776, 1.442695
    %v778 = vpow.pop %v777
    %v779 = vadd.f32 %v778, 1.0
    %v780 = vrcp.pop %v779
    %v781 = vmul.f32 1.0, %v780
    %v783 = vrot.slane %v700, 6
    %v785 = vadd.f32 %v331, %v783
    %v786 = vxor.u32 %v785, 2147483648
    %v787 = vmul.f32 %v786, 1.442695
    %v788 = vpow.pop %v787
    %v789 = vadd.f32 %v788, 1.0
    %v790 = vrcp.pop %v789
    %v791 = vmul.f32 1.0, %v790
    %v793 = vrot.slane %v769, 6
    %v795 = vmul.f32 %v781, %v793
    %v796 = vadd.f32 %v400, %v795
    %v797 = vtanh.pop %v796
    %v798 = vsub.f32 1.0, %v791
    %v799 = vmul.f32 %v798, %v797
    %v801 = vrot.slane %v630, 6
    %v803 = vmul.f32 %v791, %v801
    %v804 = vadd.f32 %v799, %v803
    %v806 = vrot.slane %v804, 2
    %808 = vmatprep.subr.mxu0 %v405
    %809 = vmatpush1.msra.mxu0 %v404
    %810 = vmatprep.subr.mxu0 %v408
    %811 = vmatpush1.msra.mxu0 %v407
    %812 = vmatprep.subr.mxu0 %v411
    %813 = vmatpush1.msra.mxu0 %v410
    %814 = vmatprep.subr.mxu0 %v414
    %815 = vmatpush1.msra.mxu0 %v413
    %816 = vmatprep.subr.mxu0 %v417
    %817 = vmatpush1.msra.mxu0 %v416
    %818 = vmatprep.subr.mxu0 %v420
    %819 = vmatpush1.msra.mxu0 %v419
    %820 = vmatprep.subr.mxu0 %v423
    %821 = vmatpush1.msra.mxu0 %v422
    %822 = vmatprep.subr.mxu0 %v426
    %823 = vmatpush1.msra.mxu0 %v425
    %824 = vmatprep.subr.mxu0 %v429
    %825 = vmatpush1.msra.mxu0 %v428
    %826 = vmatprep.subr.mxu0 %v432
    %827 = vmatpush1.msra.mxu0 %v431
    %828 = vmatprep.subr.mxu0 %v435
    %829 = vmatpush1.msra.mxu0 %v434
    %830 = vmatprep.subr.mxu0 %v438
    %831 = vmatpush1.msra.mxu0 %v437
    %832 = vmatprep.subr.mxu0 %v441
    %833 = vmatpush1.msra.mxu0 %v440
    %834 = vmatprep.subr.mxu0 %v444
    %835 = vmatpush1.msra.mxu0 %v443
    %836 = vmatprep.subr.mxu0 %v447
    %837 = vmatpush1.msra.mxu0 %v446
    %838 = vmatprep.subr.mxu0 %v450
    %839 = vmatpush1.msra.mxu0 %v449
    %840 = vmatprep.subr.mxu0 0.0
    %841 = vmatpush1.msra.mxu0 0.0
    %842 = vmatprep.subr.mxu0 0.0
    %843 = vmatpush1.msra.mxu0 0.0
    %844 = vmatprep.subr.mxu0 0.0
    %845 = vmatpush1.msra.mxu0 0.0
    %846 = vmatprep.subr.mxu0 0.0
    %847 = vmatpush1.msra.mxu0 0.0
    %848 = vmatprep.subr.mxu0 0.0
    %849 = vmatpush1.msra.mxu0 0.0
    %850 = vmatprep.subr.mxu0 0.0
    %851 = vmatpush1.msra.mxu0 0.0
    %852 = vmatprep.subr.mxu0 0.0
    %853 = vmatpush1.msra.mxu0 0.0
    %854 = vmatprep.subr.mxu0 0.0
    %855 = vmatpush1.msra.mxu0 0.0
    %856 = vmatprep.subr.mxu0 0.0
    %857 = vmatpush1.msra.mxu0 0.0
    %858 = vmatprep.subr.mxu0 0.0
    %859 = vmatpush1.msra.mxu0 0.0
    %860 = vmatprep.subr.mxu0 0.0
    %861 = vmatpush1.msra.mxu0 0.0
    %862 = vmatprep.subr.mxu0 0.0
    %863 = vmatpush1.msra.mxu0 0.0
    %864 = vmatprep.subr.mxu0 0.0
    %865 = vmatpush1.msra.mxu0 0.0
    %866 = vmatprep.subr.mxu0 0.0
    %867 = vmatpush1.msra.mxu0 0.0
    %868 = vmatprep.subr.mxu0 0.0
    %869 = vmatpush1.msra.mxu0 0.0
    %870 = vmatprep.subr.mxu0 0.0
    %871 = vmatpush1.msra.mxu0 0.0
    %872 = vmatprep.mubr.f32.mxu0 0.0
    %873 = vmatmul.mubr.f32.gmra.mrb[0].mxu0 %v806
    %v874 = vpop.f32.mrb[0].mxu0
    %v875 = vadd.f32 %v457, %v874
    %v876 = vpop.f32.mrb[0].mxu0
    %v877 = vadd.f32 %v461, %v876
    %878 = vdwg.mxu0
    %879 = vmatprep.subr.mxu0 0.0
    %880 = vmatpush1.msra.mxu0 %v406
    %881 = vmatprep.subr.mxu0 0.0
    %882 = vmatpush1.msra.mxu0 %v409
    %883 = vmatprep.subr.mxu0 0.0
    %884 = vmatpush1.msra.mxu0 %v412
    %885 = vmatprep.subr.mxu0 0.0
    %886 = vmatpush1.msra.mxu0 %v415
    %887 = vmatprep.subr.mxu0 0.0
    %888 = vmatpush1.msra.mxu0 %v418
    %889 = vmatprep.subr.mxu0 0.0
    %890 = vmatpush1.msra.mxu0 %v421
    %891 = vmatprep.subr.mxu0 0.0
    %892 = vmatpush1.msra.mxu0 %v424
    %893 = vmatprep.subr.mxu0 0.0
    %894 = vmatpush1.msra.mxu0 %v427
    %895 = vmatprep.subr.mxu0 0.0
    %896 = vmatpush1.msra.mxu0 %v430
    %897 = vmatprep.subr.mxu0 0.0
    %898 = vmatpush1.msra.mxu0 %v433
    %899 = vmatprep.subr.mxu0 0.0
    %900 = vmatpush1.msra.mxu0 %v436
    %901 = vmatprep.subr.mxu0 0.0
    %902 = vmatpush1.msra.mxu0 %v439
    %903 = vmatprep.subr.mxu0 0.0
    %904 = vmatpush1.msra.mxu0 %v442
    %905 = vmatprep.subr.mxu0 0.0
    %906 = vmatpush1.msra.mxu0 %v445
    %907 = vmatprep.subr.mxu0 0.0
    %908 = vmatpush1.msra.mxu0 %v448
    %909 = vmatprep.subr.mxu0 0.0
    %910 = vmatpush1.msra.mxu0 %v451
    %911 = vmatprep.subr.mxu0 0.0
    %912 = vmatpush1.msra.mxu0 0.0
    %913 = vmatprep.subr.mxu0 0.0
    %914 = vmatpush1.msra.mxu0 0.0
    %915 = vmatprep.subr.mxu0 0.0
    %916 = vmatpush1.msra.mxu0 0.0
    %917 = vmatprep.subr.mxu0 0.0
    %918 = vmatpush1.msra.mxu0 0.0
    %919 = vmatprep.subr.mxu0 0.0
    %920 = vmatpush1.msra.mxu0 0.0
    %921 = vmatprep.subr.mxu0 0.0
    %922 = vmatpush1.msra.mxu0 0.0
    %923 = vmatprep.subr.mxu0 0.0
    %924 = vmatpush1.msra.mxu0 0.0
    %925 = vmatprep.subr.mxu0 0.0
    %926 = vmatpush1.msra.mxu0 0.0
    %927 = vmatprep.subr.mxu0 0.0
    %928 = vmatpush1.msra.mxu0 0.0
    %929 = vmatprep.subr.mxu0 0.0
    %930 = vmatpush1.msra.mxu0 0.0
    %931 = vmatprep.subr.mxu0 0.0
    %932 = vmatpush1.msra.mxu0 0.0
    %933 = vmatprep.subr.mxu0 0.0
    %934 = vmatpush1.msra.mxu0 0.0
    %935 = vmatprep.subr.mxu0 0.0
    %936 = vmatpush1.msra.mxu0 0.0
    %937 = vmatprep.subr.mxu0 0.0
    %938 = vmatpush1.msra.mxu0 0.0
    %939 = vmatprep.subr.mxu0 0.0
    %940 = vmatpush1.msra.mxu0 0.0
    %941 = vmatprep.subr.mxu0 0.0
    %942 = vmatpush1.msra.mxu0 0.0
    %943 = vmatprep.mubr.f32.mxu0 0.0
    %944 = vmatmul.mubr.f32.gmra.mrb[0].mxu0 %v806
    %v945 = vpop.f32.mrb[0].mxu0
    %v946 = vadd.f32 %v465, %v945
    %v947 = vpop.f32.mrb[0].mxu0
    %948 = vdwg.mxu0
    %v950 = vrot.slane %v875, 4
    %v952 = vadd.f32 %v329, %v950
    %v953 = vxor.u32 %v952, 2147483648
    %v954 = vmul.f32 %v953, 1.442695
    %v955 = vpow.pop %v954
    %v956 = vadd.f32 %v955, 1.0
    %v957 = vrcp.pop %v956
    %v958 = vmul.f32 1.0, %v957
    %v960 = vrot.slane %v877, 4
    %v962 = vadd.f32 %v331, %v960
    %v963 = vxor.u32 %v962, 2147483648
    %v964 = vmul.f32 %v963, 1.442695
    %v965 = vpow.pop %v964
    %v966 = vadd.f32 %v965, 1.0
    %v967 = vrcp.pop %v966
    %v968 = vmul.f32 1.0, %v967
    %v970 = vrot.slane %v946, 4
    %v972 = vmul.f32 %v958, %v970
    %v973 = vadd.f32 %v400, %v972
    %v974 = vtanh.pop %v973
    %v975 = vsub.f32 1.0, %v968
    %v976 = vmul.f32 %v975, %v974
    %v977 = vrot.slane %v804, 6
    %v979 = vmul.f32 %v968, %v977
    %v980 = vadd.f32 %v976, %v979
    %v982 = vrot.slane %v980, 4
    %984 = vmatprep.subr.mxu0 %v405
    %985 = vmatpush1.msra.mxu0 %v404
    %986 = vmatprep.subr.mxu0 %v408
    %987 = vmatpush1.msra.mxu0 %v407
    %988 = vmatprep.subr.mxu0 %v411
    %989 = vmatpush1.msra.mxu0 %v410
    %990 = vmatprep.subr.mxu0 %v414
    %991 = vmatpush1.msra.mxu0 %v413
    %992 = vmatprep.subr.mxu0 %v417
    %993 = vmatpush1.msra.mxu0 %v416
    %994 = vmatprep.subr.mxu0 %v420
    %995 = vmatpush1.msra.mxu0 %v419
    %996 = vmatprep.subr.mxu0 %v423
    %997 = vmatpush1.msra.mxu0 %v422
    %998 = vmatprep.subr.mxu0 %v426
    %999 = vmatpush1.msra.mxu0 %v425
    %1000 = vmatprep.subr.mxu0 %v429
    %1001 = vmatpush1.msra.mxu0 %v428
    %1002 = vmatprep.subr.mxu0 %v432
    %1003 = vmatpush1.msra.mxu0 %v431
    %1004 = vmatprep.subr.mxu0 %v435
    %1005 = vmatpush1.msra.mxu0 %v434
    %1006 = vmatprep.subr.mxu0 %v438
    %1007 = vmatpush1.msra.mxu0 %v437
    %1008 = vmatprep.subr.mxu0 %v441
    %1009 = vmatpush1.msra.mxu0 %v440
    %1010 = vmatprep.subr.mxu0 %v444
    %1011 = vmatpush1.msra.mxu0 %v443
    %1012 = vmatprep.subr.mxu0 %v447
    %1013 = vmatpush1.msra.mxu0 %v446
    %1014 = vmatprep.subr.mxu0 %v450
    %1015 = vmatpush1.msra.mxu0 %v449
    %1016 = vmatprep.subr.mxu0 0.0
    %1017 = vmatpush1.msra.mxu0 0.0
    %1018 = vmatprep.subr.mxu0 0.0
    %1019 = vmatpush1.msra.mxu0 0.0
    %1020 = vmatprep.subr.mxu0 0.0
    %1021 = vmatpush1.msra.mxu0 0.0
    %1022 = vmatprep.subr.mxu0 0.0
    %1023 = vmatpush1.msra.mxu0 0.0
    %1024 = vmatprep.subr.mxu0 0.0
    %1025 = vmatpush1.msra.mxu0 0.0
    %1026 = vmatprep.subr.mxu0 0.0
    %1027 = vmatpush1.msra.mxu0 0.0
    %1028 = vmatprep.subr.mxu0 0.0
    %1029 = vmatpush1.msra.mxu0 0.0
    %1030 = vmatprep.subr.mxu0 0.0
    %1031 = vmatpush1.msra.mxu0 0.0
    %1032 = vmatprep.subr.mxu0 0.0
    %1033 = vmatpush1.msra.mxu0 0.0
    %1034 = vmatprep.subr.mxu0 0.0
    %1035 = vmatpush1.msra.mxu0 0.0
    %1036 = vmatprep.subr.mxu0 0.0
    %1037 = vmatpush1.msra.mxu0 0.0
    %1038 = vmatprep.subr.mxu0 0.0
    %1039 = vmatpush1.msra.mxu0 0.0
    %1040 = vmatprep.subr.mxu0 0.0
    %1041 = vmatpush1.msra.mxu0 0.0
    %1042 = vmatprep.subr.mxu0 0.0
    %1043 = vmatpush1.msra.mxu0 0.0
    %1044 = vmatprep.subr.mxu0 0.0
    %1045 = vmatpush1.msra.mxu0 0.0
    %1046 = vmatprep.subr.mxu0 0.0
    %1047 = vmatpush1.msra.mxu0 0.0
    %1048 = vmatprep.mubr.f32.mxu0 0.0
    %1049 = vmatmul.mubr.f32.gmra.mrb[0].mxu0 %v982
    %v1050 = vpop.f32.mrb[0].mxu0
    %v1051 = vadd.f32 %v457, %v1050
    %v1052 = vpop.f32.mrb[0].mxu0
    %v1053 = vadd.f32 %v461, %v1052
    %1054 = vdwg.mxu0
    %1055 = vmatprep.subr.mxu0 0.0
    %1056 = vmatpush1.msra.mxu0 %v406
    %1057 = vmatprep.subr.mxu0 0.0
    %1058 = vmatpush1.msra.mxu0 %v409
    %1059 = vmatprep.subr.mxu0 0.0
    %1060 = vmatpush1.msra.mxu0 %v412
    %1061 = vmatprep.subr.mxu0 0.0
    %1062 = vmatpush1.msra.mxu0 %v415
    %1063 = vmatprep.subr.mxu0 0.0
    %1064 = vmatpush1.msra.mxu0 %v418
    %1065 = vmatprep.subr.mxu0 0.0
    %1066 = vmatpush1.msra.mxu0 %v421
    %1067 = vmatprep.subr.mxu0 0.0
    %1068 = vmatpush1.msra.mxu0 %v424
    %1069 = vmatprep.subr.mxu0 0.0
    %1070 = vmatpush1.msra.mxu0 %v427
    %1071 = vmatprep.subr.mxu0 0.0
    %1072 = vmatpush1.msra.mxu0 %v430
    %1073 = vmatprep.subr.mxu0 0.0
    %1074 = vmatpush1.msra.mxu0 %v433
    %1075 = vmatprep.subr.mxu0 0.0
    %1076 = vmatpush1.msra.mxu0 %v436
    %1077 = vmatprep.subr.mxu0 0.0
    %1078 = vmatpush1.msra.mxu0 %v439
    %1079 = vmatprep.subr.mxu0 0.0
    %1080 = vmatpush1.msra.mxu0 %v442
    %1081 = vmatprep.subr.mxu0 0.0
    %1082 = vmatpush1.msra.mxu0 %v445
    %1083 = vmatprep.subr.mxu0 0.0
    %1084 = vmatpush1.msra.mxu0 %v448
    %1085 = vmatprep.subr.mxu0 0.0
    %1086 = vmatpush1.msra.mxu0 %v451
    %1087 = vmatprep.subr.mxu0 0.0
    %1088 = vmatpush1.msra.mxu0 0.0
    %1089 = vmatprep.subr.mxu0 0.0
    %1090 = vmatpush1.msra.mxu0 0.0
    %1091 = vmatprep.subr.mxu0 0.0
    %1092 = vmatpush1.msra.mxu0 0.0
    %1093 = vmatprep.subr.mxu0 0.0
    %1094 = vmatpush1.msra.mxu0 0.0
    %1095 = vmatprep.subr.mxu0 0.0
    %1096 = vmatpush1.msra.mxu0 0.0
    %1097 = vmatprep.subr.mxu0 0.0
    %1098 = vmatpush1.msra.mxu0 0.0
    %1099 = vmatprep.subr.mxu0 0.0
    %1100 = vmatpush1.msra.mxu0 0.0
    %1101 = vmatprep.subr.mxu0 0.0
    %1102 = vmatpush1.msra.mxu0 0.0
    %1103 = vmatprep.subr.mxu0 0.0
    %1104 = vmatpush1.msra.mxu0 0.0
    %1105 = vmatprep.subr.mxu0 0.0
    %1106 = vmatpush1.msra.mxu0 0.0
    %1107 = vmatprep.subr.mxu0 0.0
    %1108 = vmatpush1.msra.mxu0 0.0
    %1109 = vmatprep.subr.mxu0 0.0
    %1110 = vmatpush1.msra.mxu0 0.0
    %1111 = vmatprep.subr.mxu0 0.0
    %1112 = vmatpush1.msra.mxu0 0.0
    %1113 = vmatprep.subr.mxu0 0.0
    %1114 = vmatpush1.msra.mxu0 0.0
    %1115 = vmatprep.subr.mxu0 0.0
    %1116 = vmatpush1.msra.mxu0 0.0
    %1117 = vmatprep.subr.mxu0 0.0
    %1118 = vmatpush1.msra.mxu0 0.0
    %1119 = vmatprep.mubr.f32.mxu0 0.0
    %1120 = vmatmul.mubr.f32.gmra.mrb[0].mxu0 %v982
    %v1121 = vpop.f32.mrb[0].mxu0
    %v1122 = vadd.f32 %v465, %v1121
    %v1123 = vpop.f32.mrb[0].mxu0
    %1124 = vdwg.mxu0
    %v1126 = vrot.slane %v1051, 2
    %v1128 = vadd.f32 %v329, %v1126
    %v1129 = vxor.u32 %v1128, 2147483648
    %v1130 = vmul.f32 %v1129, 1.442695
    %v1131 = vpow.pop %v1130
    %v1132 = vadd.f32 %v1131, 1.0
    %v1133 = vrcp.pop %v1132
    %v1134 = vmul.f32 1.0, %v1133
    %v1136 = vrot.slane %v1053, 2
    %v1138 = vadd.f32 %v331, %v1136
    %v1139 = vxor.u32 %v1138, 2147483648
    %v1140 = vmul.f32 %v1139, 1.442695
    %v1141 = vpow.pop %v1140
    %v1142 = vadd.f32 %v1141, 1.0
    %v1143 = vrcp.pop %v1142
    %v1144 = vmul.f32 1.0, %v1143
    %v1146 = vrot.slane %v1122, 2
    %v1148 = vmul.f32 %v1134, %v1146
    %v1149 = vadd.f32 %v400, %v1148
    %v1150 = vtanh.pop %v1149
    %v1151 = vsub.f32 1.0, %v1144
    %v1152 = vmul.f32 %v1151, %v1150
    %v1153 = vrot.slane %v980, 6
    %v1155 = vmul.f32 %v1144, %v1153
    %v1156 = vadd.f32 %v1152, %v1155
    %1157 = vst [vmem:[#allocation2 - $0x6] sm:$0xc0] %v1156
    %vm1158 = vcmask 1041408
    %v1159 = vsel %vm1158, %v630, %v804
    %vm1160 = vcmask 1043456
    %v1161 = vsel %vm1160, %v1159, %v980
    %v1162 = vsel %vm117, %v1161, %v1156
    %1163 = vst [vmem:[#allocation12] sm:$0xff] %v1162
    // Predicated region
    $region58: #{tpu_custom_call.1} parent=1 // pred_check
      _
    $region59: #{tpu_custom_call.1} parent=1 // pred_check_branch
      %1165 = sbr.rel (0) target = $region61
    $region60: #{tpu_custom_call.1} parent=1 // pred_region
      %s1167 = ssub.s32 128, 128
      %1168 = vsyncadd [#allocation5], %s1167
      %s1170 = sshll.u32 [#allocation12], 4
      %s1171 = int_to_ptr.vmem [resolvable:$true] %s1170
      %1173 = dma.vmem_to_hbm [thread:$0]  %s1171, 128, %s8, [#allocation5]
    $region61: #{tpu_custom_call.1} parent=1 // pred_fallthru
      _
    // Predicated region
    $region62: #{tpu_custom_call.1} parent=1 // pred_check
      _
    $region63: #{tpu_custom_call.1} parent=1 // pred_check_branch
      %1175 = sbr.rel (0) target = $region65
    $region64: #{tpu_custom_call.1} parent=1 // pred_region
      %1176 = dma.done [#allocation5], 128
    $region65: #{tpu_custom_call.1} parent=1 // pred_fallthru
      _
    %1177 = vsyncpa [#allocation4], 1
    %1178 = vsyncpa [#allocation7], 1
    %1179 = vsyncpa [#allocation10], 1
    %1180 = vsyncpa [#allocation5], 1

</llo_original>
